<compile_context>
chip_gen: v6e
topology: v6e:2x2x1
jax: 0.10.0
libtpu: 0.0.40
codegen_flags: <defaults>
</compile_context>

<pallas_src>
import functools
import math

import jax
import jax.numpy as jnp
from jax.experimental import pallas as pl
from jax.experimental.pallas import tpu as pltpu

BN_EPS = 1e-3
SE_RATIO = 0.25

# EfficientNet-B0 block args: (num_repeat, kernel, stride, expand, in_ch, out_ch)
BLOCK_ARGS = [
    (1, 3, 1, 1, 32, 16),
    (2, 3, 2, 6, 16, 24),
    (2, 5, 2, 6, 24, 40),
    (3, 3, 2, 6, 40, 80),
    (3, 5, 1, 6, 80, 112),
    (4, 5, 2, 6, 112, 192),
    (1, 3, 1, 6, 192, 320),
]


def block_configs():
    cfgs = []
    for (r, k, s, e, i, o) in BLOCK_ARGS:
        for j in range(r):
            cfgs.append(dict(ksize=k, stride=(s if j == 0 else 1),
                             expand=e, in_ch=(i if j == 0 else o), out_ch=o))
    return cfgs


_PARALLEL = pltpu.CompilerParams(dimension_semantics=("parallel",))


def _swish_f32(v):
    # x * sigmoid(x); exp argument clamped so the EUP reciprocal never sees inf.
    e = jnp.exp(jnp.minimum(-v, 60.0))
    return v * pl.reciprocal(1.0 + e, approx=True)


# ---------------------------------------------------------------------------
# Pallas kernels
# ---------------------------------------------------------------------------
def _matmul_bias_act_kernel(x_ref, w_ref, b_ref, o_ref, *, act):
    x = x_ref[...].astype(jnp.bfloat16)                 # MXU runs at bf16 peak
    acc = jnp.dot(x, w_ref[...], preferred_element_type=jnp.float32)
    acc = acc + b_ref[...]
    if act == "swish":
        acc = _swish_f32(acc)
    o_ref[...] = acc.astype(o_ref.dtype)


def _pick_tm(m):
    # Prefer a grid with >=2 steps so the "parallel" axis shards across both
    # v7x TensorCores, while keeping tiles >=128 rows to amortize per-step
    # overhead. Falls back to whole-M for small matmuls (grid of 1).
    for t in (1024, 512, 256, 128):
        if m % t == 0 and m // t >= 2:
            return t
    if m <= 1024:
        return m
    for t in (1024, 512, 256, 128):
        if m % t == 0:
            return t
    return m


def matmul_bias_act(x, w, b, act="none"):
    """y = act(x @ w + b); x:(M,K) f32, w:(K,N) bf16, b:(N,) f32."""
    M, K = x.shape
    N = w.shape[1]
    tm = _pick_tm(M)
    return pl.pallas_call(
        functools.partial(_matmul_bias_act_kernel, act=act),
        out_shape=jax.ShapeDtypeStruct((M, N), jnp.float32),
        grid=(M // tm,),
        in_specs=[
            pl.BlockSpec((tm, K), lambda i: (i, 0)),
            pl.BlockSpec((K, N), lambda i: (0, 0)),
            pl.BlockSpec((1, N), lambda i: (0, 0)),
        ],
        out_specs=pl.BlockSpec((tm, N), lambda i: (i, 0)),
        compiler_params=_PARALLEL,
    )(x, w, b.reshape(1, N))


def _dwconv_kernel(x_ref, w_ref, b_ref, o_ref, pool_ref, *,
                   k, stride, out_h, out_w):
    # x_ref: (1, s*s, PH, PW, C) phase-split padded input; w_ref: (k*k, C)
    # with BN folded; b_ref: (1, C) folded BN bias.
    x = x_ref[0]
    w = w_ref[...]
    b = b_ref[...]
    c = x.shape[-1]
    acc = jnp.zeros((out_h, out_w, c), jnp.float32)
    for dy in range(k):
        for dx in range(k):
            ph_idx = (dy % stride) * stride + (dx % stride)
            oy, ox = dy // stride, dx // stride
            tap = x[ph_idx, oy:oy + out_h, ox:ox + out_w, :]
            acc = acc + tap * w[dy * k + dx]
    acc = acc + b[0]
    acc = _swish_f32(acc)
    o_ref[...] = acc[None].astype(o_ref.dtype)
    # Spatial sum for the squeeze-excite global average pool (fused, no extra
    # HBM pass over the activation).
    pool_ref[...] = jnp.sum(acc, axis=(0, 1), keepdims=True)


def depthwise_conv_bn_swish_pool(x, w, b, *, ksize, stride):
    """TF-SAME depthwise conv + folded BN + swish, strided output computed
    directly in-kernel. Returns (y, pool_sum) with y:(N,oh,ow,C), pool:(N,1,C)."""
    n, h, wd, c = x.shape
    oh = -(-h // stride)
    ow = -(-wd // stride)
    pad_h = max((oh - 1) * stride + ksize - h, 0)
    pad_w = max((ow - 1) * stride + ksize - wd, 0)
    xp = jnp.pad(x, ((0, 0),
                     (pad_h // 2, pad_h - pad_h // 2),
                     (pad_w // 2, pad_w - pad_w // 2),
                     (0, 0)))
    halo = (ksize - 1) // stride
    ph, pw = oh + halo, ow + halo
    if stride == 1:
        phases = xp[:, None]                              # (n, 1, ph, pw, c)
    else:
        # Split into stride x stride spatial phases so every in-kernel tap is a
        # contiguous slice and the strided output is produced directly.
        extra_h = max(ph * stride - xp.shape[1], 0)
        extra_w = max(pw * stride - xp.shape[2], 0)
        xp = jnp.pad(xp, ((0, 0), (0, extra_h), (0, extra_w), (0, 0)))
        phs = [xp[:, py::stride, px::stride, :][:, :ph, :pw, :]
               for py in range(stride) for px in range(stride)]
        phases = jnp.stack(phs, axis=1)                   # (n, s*s, ph, pw, c)
    s2 = phases.shape[1]
    y, pool = pl.pallas_call(
        functools.partial(_dwconv_kernel, k=ksize, stride=stride,
                          out_h=oh, out_w=ow),
        out_shape=(jax.ShapeDtypeStruct((n, oh, ow, c), jnp.float32),
                   jax.ShapeDtypeStruct((n, 1, c), jnp.float32)),
        grid=(n,),
        in_specs=[
            pl.BlockSpec((1, s2, ph, pw, c), lambda i: (i, 0, 0, 0, 0)),
            pl.BlockSpec((ksize * ksize, c), lambda i: (0, 0)),
            pl.BlockSpec((1, c), lambda i: (0, 0)),
        ],
        out_specs=(
            pl.BlockSpec((1, oh, ow, c), lambda i: (i, 0, 0, 0)),
            pl.BlockSpec((1, 1, c), lambda i: (i, 0, 0)),
        ),
        compiler_params=_PARALLEL,
    )(phases, w, b.reshape(1, c))
    return y, pool


def _proj_se_kernel(x_ref, s_ref, w_ref, b_ref, o_ref):
    x = (x_ref[0] * s_ref[0]).astype(jnp.bfloat16)        # SE scale fused here
    acc = jnp.dot(x, w_ref[...], preferred_element_type=jnp.float32)
    acc = acc + b_ref[...]
    o_ref[...] = acc[None].astype(o_ref.dtype)


def _proj_se_res_kernel(x_ref, s_ref, w_ref, b_ref, r_ref, o_ref):
    x = (x_ref[0] * s_ref[0]).astype(jnp.bfloat16)
    acc = jnp.dot(x, w_ref[...], preferred_element_type=jnp.float32)
    acc = acc + b_ref[...] + r_ref[0]                     # residual fused here
    o_ref[...] = acc[None].astype(o_ref.dtype)


def proj_conv_se(x, scale, w, b, residual=None):
    """(x * scale) @ w + b [+ residual]; per-batch grid so the SE channel scale
    and residual add live in the projection matmul epilogue."""
    n, oh, ow, cin = x.shape
    cout = w.shape[1]
    p = oh * ow
    xr = x.reshape(n, p, cin)
    sr = scale.reshape(n, 1, cin)
    br = b.reshape(1, cout)
    common = dict(
        out_shape=jax.ShapeDtypeStruct((n, p, cout), jnp.float32),
        grid=(n,),
        out_specs=pl.BlockSpec((1, p, cout), lambda i: (i, 0, 0)),
        compiler_params=_PARALLEL,
    )
    x_spec = pl.BlockSpec((1, p, cin), lambda i: (i, 0, 0))
    s_spec = pl.BlockSpec((1, 1, cin), lambda i: (i, 0, 0))
    w_spec = pl.BlockSpec((cin, cout), lambda i: (0, 0))
    b_spec = pl.BlockSpec((1, cout), lambda i: (0, 0))
    if residual is None:
        y = pl.pallas_call(_proj_se_kernel,
                           in_specs=[x_spec, s_spec, w_spec, b_spec],
                           **common)(xr, sr, w, br)
    else:
        r_spec = pl.BlockSpec((1, p, cout), lambda i: (i, 0, 0))
        y = pl.pallas_call(_proj_se_res_kernel,
                           in_specs=[x_spec, s_spec, w_spec, b_spec, r_spec],
                           **common)(xr, sr, w, br, residual.reshape(n, p, cout))
    return y.reshape(n, oh, ow, cout)


# ---------------------------------------------------------------------------
# JAX glue around the kernels
# ---------------------------------------------------------------------------
def conv1x1(x, w, b, act):
    n, h, wd, cin = x.shape
    cout = w.shape[1]
    y = matmul_bias_act(x.reshape(n * h * wd, cin), w, b, act=act)
    return y.reshape(n, h, wd, cout)


def stem_conv_bn_swish(x, w, b):
    """3x3 stride-2 full conv (3->32) via im2col + Pallas matmul (K padded to 32)."""
    k, s = 3, 2
    n, h, wd, c = x.shape
    oh, ow = -(-h // s), -(-wd // s)
    pad_h = max((oh - 1) * s + k - h, 0)
    pad_w = max((ow - 1) * s + k - wd, 0)
    xp = jnp.pad(x, ((0, 0),
                     (pad_h // 2, pad_h - pad_h // 2),
                     (pad_w // 2, pad_w - pad_w // 2),
                     (0, 0)))
    patches = []
    for dy in range(k):
        for dx in range(k):
            patches.append(xp[:, dy:dy + (oh - 1) * s + 1:s,
                              dx:dx + (ow - 1) * s + 1:s, :])
    pat = jnp.concatenate(patches, axis=-1)              # (N, oh, ow, k*k*C)
    kk = k * k * c
    kp = w.shape[0]                                      # K padded for the MXU
    if kp > kk:
        pat = jnp.pad(pat, ((0, 0), (0, 0), (0, 0), (0, kp - kk)))
    y = matmul_bias_act(pat.reshape(n * oh * ow, kp), w, b, act="swish")
    return y.reshape(n, oh, ow, w.shape[1])


def mbconv(x, p, *, ksize, stride, expand, in_ch, out_ch):
    inputs = x
    if expand != 1:
        x = conv1x1(x, p["expand_w"], p["expand_b"], act="swish")
    x, pool = depthwise_conv_bn_swish_pool(x, p["dw_w"], p["dw_b"],
                                           ksize=ksize, stride=stride)
    n, oh, ow, mid = x.shape
    # Squeeze-and-excitation: the pool was accumulated inside the depthwise
    # kernel; the two tiny (batch x channels) FCs stay in XLA; the resulting
    # channel scale is applied inside the projection matmul kernel.
    s = pool.reshape(n, mid) * (1.0 / float(oh * ow))
    h1 = s @ p["se_r_w"] + p["se_r_b"]
    h1 = h1 * jax.nn.sigmoid(h1)                          # swish
    scale = jax.nn.sigmoid(h1 @ p["se_e_w"] + p["se_e_b"])
    residual = inputs if (stride == 1 and in_ch == out_ch) else None
    # drop_connect is a no-op in eval mode.
    return proj_conv_se(x, scale, p["proj_w"], p["proj_b"], residual)


# ---------------------------------------------------------------------------
# Deterministic parameter construction (BN folded into conv weights)
# ---------------------------------------------------------------------------
def _fold_bn(gamma, beta, mean, var):
    scale = gamma / jnp.sqrt(var + BN_EPS)
    return scale, beta - mean * scale


def init_params(key):
    keys = list(jax.random.split(key, 512))
    kidx = [0]

    def nk():
        k = keys[kidx[0]]
        kidx[0] += 1
        return k

    def conv_w(shape, fan_in):
        return jax.random.normal(nk(), shape, jnp.float32) * math.sqrt(2.0 / fan_in)

    def bn(c):
        # PyTorch BN defaults: gamma=1, beta=0, running_mean=0, running_var=1
        return _fold_bn(jnp.ones((c,), jnp.float32), jnp.zeros((c,), jnp.float32),
                        jnp.zeros((c,), jnp.float32), jnp.ones((c,), jnp.float32))

    params = {}
    stem_w = conv_w((27, 32), 27)          # (dy, dx, cin) x cout, im2col layout
    sc, bi = bn(32)
    stem_w = stem_w * sc[None, :]
    stem_w = jnp.pad(stem_w, ((0, 5), (0, 0)))   # pad K 27 -> 32 (zero rows)
    params["stem_w"] = stem_w.astype(jnp.bfloat16)
    params["stem_b"] = bi

    blocks = []
    for cfg in block_configs():
        in_ch, out_ch, k, e = cfg["in_ch"], cfg["out_ch"], cfg["ksize"], cfg["expand"]
        mid = in_ch * e
        p = {}
        if e != 1:
            w = conv_w((in_ch, mid), in_ch)
            sc, bi = bn(mid)
            p["expand_w"] = (w * sc[None, :]).astype(jnp.bfloat16)
            p["expand_b"] = bi
        dw = conv_w((k * k, mid), k * k)
        sc, bi = bn(mid)
        p["dw_w"], p["dw_b"] = dw * sc[None, :], bi       # VPU path stays f32
        se_ch = max(1, int(in_ch * SE_RATIO))
        p["se_r_w"] = conv_w((mid, se_ch), mid)
        p["se_r_b"] = jnp.zeros((se_ch,), jnp.float32)
        p["se_e_w"] = conv_w((se_ch, mid), se_ch)
        p["se_e_b"] = jnp.zeros((mid,), jnp.float32)
        pw = conv_w((mid, out_ch), mid)
        sc, bi = bn(out_ch)
        p["proj_w"] = (pw * sc[None, :]).astype(jnp.bfloat16)
        p["proj_b"] = bi
        blocks.append(p)
    params["blocks"] = blocks
    return params


# ---------------------------------------------------------------------------
# Full forward: extract_endpoints semantics
# ---------------------------------------------------------------------------
def efficientnet_b0_endpoints(x_nchw, params):
    x = jnp.transpose(x_nchw, (0, 2, 3, 1)).astype(jnp.float32)   # NCHW -> NHWC
    x = stem_conv_bn_swish(x, params["stem_w"], params["stem_b"])
    endpoints = {}
    prev = x
    cfgs = block_configs()
    for idx, (cfg, bp) in enumerate(zip(cfgs, params["blocks"])):
        x = mbconv(x, bp, **cfg)
        if prev.shape[1] > x.shape[1]:                    # spatial reduction
            endpoints["reduction_{}".format(len(endpoints) + 1)] = prev
        elif idx == len(cfgs) - 1:
            endpoints["reduction_{}".format(len(endpoints) + 1)] = x
        prev = x
    # TODO(synk): the library's extract_endpoints would append one more endpoint
    # via _conv_head/_bn1, but EfficientNetB0.__init__ deletes those modules.
    return {k: jnp.transpose(v, (0, 3, 1, 2)) for k, v in endpoints.items()}


if __name__ == "__main__":
    root = jax.random.PRNGKey(0)
    pkey, xkey = jax.random.split(root)
    params = init_params(pkey)
    x = jax.random.normal(xkey, (2, 3, 64, 64), jnp.float32)   # NCHW like PyTorch
    endpoints = efficientnet_b0_endpoints(x, params)
    for v in endpoints.values():
        jax.block_until_ready(v)
    expected = {
        "reduction_1": (2, 16, 32, 32),
        "reduction_2": (2, 24, 16, 16),
        "reduction_3": (2, 40, 8, 8),
        "reduction_4": (2, 112, 4, 4),
        "reduction_5": (2, 320, 2, 2),
    }
    got = {k: tuple(v.shape) for k, v in endpoints.items()}
    assert got == expected, got
    print("KERNEL_OK")
</pallas_src>

<mosaic_0001>
module attributes {stable_mosaic.version = 11 : i64} {
  func.func @_matmul_bias_act_kernel(%arg0: i32, %arg1: memref<1024x32xf32, #tpu.memory_space<vmem>>, %arg2: memref<32x32xbf16, #tpu.memory_space<vmem>>, %arg3: memref<1x32xf32, #tpu.memory_space<vmem>>, %arg4: memref<1024x32xf32, #tpu.memory_space<vmem>>) attributes {dimension_semantics = [#tpu.dimension_semantics<parallel>], iteration_bounds = array<i64: 2>, scalar_prefetch = 0 : i64, scratch_operands = 0 : i64, tpu.core_type = #tpu.core_type<tc>, window_params = [{transform_indices = @transform_0, window_bounds = array<i64: 1024, 32>}, {pipeline_mode = #tpu.pipeline_mode<synchronous>, transform_indices = @transform_1, window_bounds = array<i64: 32, 32>}, {pipeline_mode = #tpu.pipeline_mode<synchronous>, transform_indices = @transform_2, window_bounds = array<i64: 1, 32>}, {transform_indices = @transform_3, window_bounds = array<i64: 1024, 32>}]} {
    %c0 = arith.constant 0 : index
    %c0_0 = arith.constant 0 : index
    %0 = vector.load %arg1[%c0, %c0_0] : memref<1024x32xf32, #tpu.memory_space<vmem>>, vector<1024x32xf32>
    %1 = arith.truncf %0 : vector<1024x32xf32> to vector<1024x32xbf16>
    %c0_1 = arith.constant 0 : index
    %c0_2 = arith.constant 0 : index
    %2 = vector.load %arg2[%c0_1, %c0_2] : memref<32x32xbf16, #tpu.memory_space<vmem>>, vector<32x32xbf16>
    %cst = arith.constant dense<0.000000e+00> : vector<1024x32xf32>
    %3 = tpu.matmul %1, %2, %cst {dimension_numbers = #tpu.dot_dimension_numbers<[1], [0], [0], [1], [0, 0, 1, 1], [], []>} : vector<1024x32xbf16>, vector<32x32xbf16>, vector<1024x32xf32> -> vector<1024x32xf32>
    %c0_3 = arith.constant 0 : index
    %c0_4 = arith.constant 0 : index
    %4 = vector.load %arg3[%c0_3, %c0_4] : memref<1x32xf32, #tpu.memory_space<vmem>>, vector<1x32xf32>
    %5 = vector.broadcast %4 : vector<1x32xf32> to vector<1024x32xf32>
    %6 = arith.addf %3, %5 : vector<1024x32xf32>
    %cst_5 = arith.constant 0.000000e+00 : f32
    %7 = vector.broadcast %cst_5 : f32 to vector<1024x32xf32>
    %8 = arith.subf %7, %6 : vector<1024x32xf32>
    %cst_6 = arith.constant 6.000000e+01 : f32
    %9 = vector.broadcast %cst_6 : f32 to vector<1024x32xf32>
    %10 = arith.minimumf %8, %9 : vector<1024x32xf32>
    %11 = math.exp %10 : vector<1024x32xf32>
    %cst_7 = arith.constant 1.000000e+00 : f32
    %12 = vector.broadcast %cst_7 : f32 to vector<1024x32xf32>
    %13 = arith.addf %12, %11 : vector<1024x32xf32>
    %14 = tpu.reciprocal %13 {approx = true} : vector<1024x32xf32> -> vector<1024x32xf32>
    %15 = arith.mulf %6, %14 : vector<1024x32xf32>
    %c0_8 = arith.constant 0 : index
    %c0_9 = arith.constant 0 : index
    %16 = vector.load %arg4[%c0_8, %c0_9] : memref<1024x32xf32, #tpu.memory_space<vmem>>, vector<1024x32xf32>
    tpu.vector_store %arg4[%c0_8, %c0_9], %15 {strides = array<i32>} : memref<1024x32xf32, #tpu.memory_space<vmem>>, vector<1024x32xf32>,
    return
  }
  func.func @transform_0(%arg0: i32) -> (i32, i32) {
    %c0_i32 = arith.constant 0 : i32
    %c0_i32_0 = arith.constant 0 : i32
    return %arg0, %c0_i32 : i32, i32
  }
  func.func @transform_1(%arg0: i32) -> (i32, i32) {
    %c0_i32 = arith.constant 0 : i32
    %c0_i32_0 = arith.constant 0 : i32
    %c0_i32_1 = arith.constant 0 : i32
    return %c0_i32, %c0_i32_0 : i32, i32
  }
  func.func @transform_2(%arg0: i32) -> (i32, i32) {
    %c0_i32 = arith.constant 0 : i32
    %c0_i32_0 = arith.constant 0 : i32
    %c0_i32_1 = arith.constant 0 : i32
    return %c0_i32, %c0_i32_0 : i32, i32
  }
  func.func @transform_3(%arg0: i32) -> (i32, i32) {
    %c0_i32 = arith.constant 0 : i32
    %c0_i32_0 = arith.constant 0 : i32
    return %arg0, %c0_i32 : i32, i32
  }
}

</mosaic_0001>

<llo_original>
// kernel: tpu_custom_call.1
$region0: #{tpu_custom_call.1}
  #allocation0 [shape = 'u32[]', space=smem, size = 0x4, offset = 0x4, fixed_abs, tag = 'smem constant byte address 0x4 - core index']
  #allocation1 [shape = 'u32[144,128]{1,0:T(1,128)}', space=vmem, size = 0x12000, scoped, tag = 'internal scratch']
  %s0 = inlined_call_operand.vmem [shape: f32[2048,32], index: 0, kind: input, shape index: {}]
  %s1 = inlined_call_operand.vmem [shape: bf16[32,32], index: 1, kind: input, shape index: {}]
  %s2 = inlined_call_operand.vmem [shape: f32[1,32], index: 2, kind: input, shape index: {}]
  %s3 = inlined_call_operand.vmem [shape: f32[2048,32], index: 3, kind: output, shape index: {}]
  %s4 = sld [smem:[#allocation0]]
  $region45: #{tpu_custom_call.1} parent=0
    _
  %s6 = ssub.s32 1, %s4
  %s7 = scalar_select 0, %s6, %s4
  loop: start=0, step=1, limit=4
  $region2: #{tpu_custom_call.1} parent=0 // loop_pre_header
    _
  $region3: #{tpu_custom_call.1} parent=0 // loop_header
    %s9 = sphi 0, %s13
    %p10 = scmp.ge.s32.totalorder %s9, 4
    %s19 = sphi 0, %s21
    %s22 = sphi 0, %s19
    %s23 = sphi 0, %s22
    %s39 = sphi 0, %s23
    %s43 = sphi 0, %s43
    %s45 = sphi 0, %s43
    %s46 = sphi 0, %s45
    %s60 = sphi 0, %s46
    %s64 = sphi 0, %s64
    %s66 = sphi 0, %s64
    %s67 = sphi 0, %s66
    %s81 = sphi 0, %s67
    %s87 = sphi 0, %s89
    %s90 = sphi 0, %s87
    %s91 = sphi 0, %s90
    %s107 = sphi 0, %s91
  $region4: #{tpu_custom_call.1} parent=0 // loop_header_branch
    %12 = sbr.rel (%p10) target = $region8
  $region5: #{tpu_custom_call.1} parent=0 // loop_body
    %s14 = ssub.s32 %s9, 1
    %s15 = ssub.s32 %s9, 2
    %s16 = sadd.s32 %s9, 1
    %s17 = ssub.s32 %s9, %s16
    %p18 = scmp.eq.s32.totalorder %s17, 0
    %s20 = sadd.s32 %s19, 1
    %s21 = scalar_select %p18, %s19, %s20
    %p24 = pneg %p18
    %p25 = scmp.eq.s32.totalorder %s9, 1
    %p26 = por %p24, %p25
    %p27 = scmp.ne.s32.totalorder %s19, %s22
    %p28 = scmp.eq.s32.totalorder %s9, 0
    %p29 = por %p27, %p28
    %p30 = scmp.ne.s32.totalorder %s19, %s22
    %p31 = scmp.eq.s32.totalorder %s14, 1
    %p32 = por %p30, %p31
    %p33 = scmp.ne.s32.totalorder %s22, %s23
    %p34 = scmp.eq.s32.totalorder %s14, 0
    %p35 = por %p33, %p34
    %p36 = scmp.ne.s32.totalorder %s22, %s23
    %p37 = scmp.eq.s32.totalorder %s15, 1
    %p38 = por %p36, %p37
    %p40 = scmp.ne.s32.totalorder %s23, %s39
    %p41 = scmp.eq.s32.totalorder %s15, 0
    %p42 = por %p40, %p41
    %s44 = sadd.s32 %s43, 1
    %p47 = scmp.eq.s32.totalorder %s9, 1
    %p48 = scmp.ne.s32.totalorder %s43, %s45
    %p49 = scmp.eq.s32.totalorder %s9, 0
    %p50 = por %p48, %p49
    %p51 = scmp.ne.s32.totalorder %s43, %s45
    %p52 = scmp.eq.s32.totalorder %s14, 1
    %p53 = por %p51, %p52
    %p54 = scmp.ne.s32.totalorder %s45, %s46
    %p55 = scmp.eq.s32.totalorder %s14, 0
    %p56 = por %p54, %p55
    %p57 = scmp.ne.s32.totalorder %s45, %s46
    %p58 = scmp.eq.s32.totalorder %s15, 1
    %p59 = por %p57, %p58
    %p61 = scmp.ne.s32.totalorder %s46, %s60
    %p62 = scmp.eq.s32.totalorder %s15, 0
    %p63 = por %p61, %p62
    %s65 = sadd.s32 %s64, 1
    %p68 = scmp.eq.s32.totalorder %s9, 1
    %p69 = scmp.ne.s32.totalorder %s64, %s66
    %p70 = scmp.eq.s32.totalorder %s9, 0
    %p71 = por %p69, %p70
    %p72 = scmp.ne.s32.totalorder %s64, %s66
    %p73 = scmp.eq.s32.totalorder %s14, 1
    %p74 = por %p72, %p73
    %p75 = scmp.ne.s32.totalorder %s66, %s67
    %p76 = scmp.eq.s32.totalorder %s14, 0
    %p77 = por %p75, %p76
    %p78 = scmp.ne.s32.totalorder %s66, %s67
    %p79 = scmp.eq.s32.totalorder %s15, 1
    %p80 = por %p78, %p79
    %p82 = scmp.ne.s32.totalorder %s67, %s81
    %p83 = scmp.eq.s32.totalorder %s15, 0
    %p84 = por %p82, %p83
    %s85 = ssub.s32 %s9, %s16
    %p86 = scmp.eq.s32.totalorder %s85, 0
    %s88 = sadd.s32 %s87, 1
    %s89 = scalar_select %p86, %s87, %s88
    %p92 = pneg %p86
    %p93 = scmp.eq.s32.totalorder %s9, 1
    %p94 = por %p92, %p93
    %p95 = scmp.ne.s32.totalorder %s87, %s90
    %p96 = scmp.eq.s32.totalorder %s9, 0
    %p97 = por %p95, %p96
    %p98 = scmp.ne.s32.totalorder %s87, %s90
    %p99 = scmp.eq.s32.totalorder %s14, 1
    %p100 = por %p98, %p99
    %p101 = scmp.ne.s32.totalorder %s90, %s91
    %p102 = scmp.eq.s32.totalorder %s14, 0
    %p103 = por %p101, %p102
    %p104 = scmp.ne.s32.totalorder %s90, %s91
    %p105 = scmp.eq.s32.totalorder %s15, 1
    %p106 = por %p104, %p105
    %p108 = scmp.ne.s32.totalorder %s91, %s107
    %p109 = scmp.eq.s32.totalorder %s15, 0
    %p110 = por %p108, %p109
    %p111 = scmp.le.s32.totalorder 1, %s9
    %p112 = scmp.lt.s32.totalorder %s9, 3
    %p113 = pnand %p111, %p112
    %p114 = pneg %p113
    // Predicated region
    $region9: #{tpu_custom_call.1} parent=5 // pred_check
      _
    $region10: #{tpu_custom_call.1} parent=5 // pred_check_branch
      %116 = sbr.rel (%p113) target = $region12
    $region11: #{tpu_custom_call.1} parent=5 // pred_region
      %s117 = ssub.s32 %s9, 1
      // Predicated region
      $region13: #{tpu_custom_call.1} parent=11 // pred_check
        %p118 = pneg %p56
      $region14: #{tpu_custom_call.1} parent=11 // pred_check_branch
        %120 = sbr.rel (%p118) target = $region16
      $region15: #{tpu_custom_call.1} parent=11 // pred_region
        _
      $region16: #{tpu_custom_call.1} parent=11 // pred_fallthru
        _
      // Predicated region
      $region17: #{tpu_custom_call.1} parent=11 // pred_check
        %p121 = pneg %p77
      $region18: #{tpu_custom_call.1} parent=11 // pred_check_branch
        %123 = sbr.rel (%p121) target = $region20
      $region19: #{tpu_custom_call.1} parent=11 // pred_region
        _
      $region20: #{tpu_custom_call.1} parent=11 // pred_fallthru
        _
    $region12: #{tpu_custom_call.1} parent=5 // pred_fallthru
      _
    %p124 = scmp.lt.s32.totalorder %s9, 2
    // Predicated region
    $region21: #{tpu_custom_call.1} parent=5 // pred_check
      %p125 = pneg %p124
    $region22: #{tpu_custom_call.1} parent=5 // pred_check_branch
      %127 = sbr.rel (%p125) target = $region24
    $region23: #{tpu_custom_call.1} parent=5 // pred_region
      // Predicated region
      $region25: #{tpu_custom_call.1} parent=23 // pred_check
        %p128 = pneg %p29
      $region26: #{tpu_custom_call.1} parent=23 // pred_check_branch
        %130 = sbr.rel (%p128) target = $region28
      $region27: #{tpu_custom_call.1} parent=23 // pred_region
        %s131 = smul.u32 128, %s9
        %p132 = scmp.lt.s32.totalorder %s131, 255
        %s133 = scalar_select %p132, %s131, 255
        %s134 = smul.addr %s133, 8
        %s135 = scalar_lea.vmem %s0, %s134
        %s136 = smul.u32 128, %s9
      $region28: #{tpu_custom_call.1} parent=23 // pred_fallthru
        _
    $region24: #{tpu_custom_call.1} parent=5 // pred_fallthru
      _
    %p137 = scmp.le.s32.totalorder 1, %s9
    %p138 = scmp.lt.s32.totalorder %s9, 3
    %p139 = pnand %p137, %p138
    %p140 = pneg %p139
    // Predicated region
    $region29: #{tpu_custom_call.1} parent=5 // pred_check
      _
    $region30: #{tpu_custom_call.1} parent=5 // pred_check_branch
      %142 = sbr.rel (%p139) target = $region32
    $region31: #{tpu_custom_call.1} parent=5 // pred_region
      %s143 = ssub.s32 %s9, 1
      %s144 = smul.u32 128, %s14
      %p145 = scmp.lt.s32.totalorder %s144, 255
      %s146 = scalar_select %p145, %s144, 255
      %s147 = smul.addr %s146, 8
      %s148 = scalar_lea.vmem %s0, %s147
      %p149 = pneg %p35
      %p150 = pneg %p32
      %p151 = pneg %p56
      %p152 = pneg %p53
      %p153 = pneg %p77
      %p154 = pneg %p74
      %p155 = pneg %p103
      %p156 = pneg %p100
      %s157 = smul.u32 128, %s14
      %p158 = scmp.lt.s32.totalorder %s157, 255
      %s159 = scalar_select %p158, %s157, 255
      %s160 = smul.addr %s159, 8
      %s161 = scalar_lea.vmem %s3, %s160
      %s162 = smul.u32 128, %s14
      %p163 = scmp.lt.s32.totalorder %s162, 255
      %s164 = scalar_select %p163, %s162, 255
      %s165 = smul.addr %s164, 8
      %s166 = scalar_lea.vmem %s0, %s165
      %s167 = smul.u32 128, %s14
      %s168 = smul.u32 128, %s14
      %p169 = scmp.lt.s32.totalorder %s168, 255
      %s170 = scalar_select %p169, %s168, 255
      %s171 = smul.addr %s170, 8
      %s172 = scalar_lea.vmem %s3, %s171
      %s173 = smul.u32 128, %s14
      %v175 = vld [vmem:[%s166] sm:$0xff]
      %v176 = vld [vmem:[%s166 + $0x8] sm:$0xff]
      %v177 = vld [vmem:[%s166 + $0x10] sm:$0xff]
      %v178 = vld [vmem:[%s166 + $0x18] sm:$0xff]
      %v179 = vld [vmem:[%s166 + $0x20] sm:$0xff]
      %v180 = vld [vmem:[%s166 + $0x28] sm:$0xff]
      %v181 = vld [vmem:[%s166 + $0x30] sm:$0xff]
      %v182 = vld [vmem:[%s166 + $0x38] sm:$0xff]
      %v183 = vld [vmem:[%s166 + $0x40] sm:$0xff]
      %v184 = vld [vmem:[%s166 + $0x48] sm:$0xff]
      %v185 = vld [vmem:[%s166 + $0x50] sm:$0xff]
      %v186 = vld [vmem:[%s166 + $0x58] sm:$0xff]
      %v187 = vld [vmem:[%s166 + $0x60] sm:$0xff]
      %v188 = vld [vmem:[%s166 + $0x68] sm:$0xff]
      %v189 = vld [vmem:[%s166 + $0x70] sm:$0xff]
      %v190 = vld [vmem:[%s166 + $0x78] sm:$0xff]
      %v191 = vld [vmem:[%s166 + $0x80] sm:$0xff]
      %v192 = vld [vmem:[%s166 + $0x88] sm:$0xff]
      %v193 = vld [vmem:[%s166 + $0x90] sm:$0xff]
      %v194 = vld [vmem:[%s166 + $0x98] sm:$0xff]
      %v195 = vld [vmem:[%s166 + $0xa0] sm:$0xff]
      %v196 = vld [vmem:[%s166 + $0xa8] sm:$0xff]
      %v197 = vld [vmem:[%s166 + $0xb0] sm:$0xff]
      %v198 = vld [vmem:[%s166 + $0xb8] sm:$0xff]
      %v199 = vld [vmem:[%s166 + $0xc0] sm:$0xff]
      %v200 = vld [vmem:[%s166 + $0xc8] sm:$0xff]
      %v201 = vld [vmem:[%s166 + $0xd0] sm:$0xff]
      %v202 = vld [vmem:[%s166 + $0xd8] sm:$0xff]
      %v203 = vld [vmem:[%s166 + $0xe0] sm:$0xff]
      %v204 = vld [vmem:[%s166 + $0xe8] sm:$0xff]
      %v205 = vld [vmem:[%s166 + $0xf0] sm:$0xff]
      %v206 = vld [vmem:[%s166 + $0xf8] sm:$0xff]
      %v207 = vld [vmem:[%s166 + $0x100] sm:$0xff]
      %v208 = vld [vmem:[%s166 + $0x108] sm:$0xff]
      %v209 = vld [vmem:[%s166 + $0x110] sm:$0xff]
      %v210 = vld [vmem:[%s166 + $0x118] sm:$0xff]
      %v211 = vld [vmem:[%s166 + $0x120] sm:$0xff]
      %v212 = vld [vmem:[%s166 + $0x128] sm:$0xff]
      %v213 = vld [vmem:[%s166 + $0x130] sm:$0xff]
      %v214 = vld [vmem:[%s166 + $0x138] sm:$0xff]
      %v215 = vld [vmem:[%s166 + $0x140] sm:$0xff]
      %v216 = vld [vmem:[%s166 + $0x148] sm:$0xff]
      %v217 = vld [vmem:[%s166 + $0x150] sm:$0xff]
      %v218 = vld [vmem:[%s166 + $0x158] sm:$0xff]
      %v219 = vld [vmem:[%s166 + $0x160] sm:$0xff]
      %v220 = vld [vmem:[%s166 + $0x168] sm:$0xff]
      %v221 = vld [vmem:[%s166 + $0x170] sm:$0xff]
      %v222 = vld [vmem:[%s166 + $0x178] sm:$0xff]
      %v223 = vld [vmem:[%s166 + $0x180] sm:$0xff]
      %v224 = vld [vmem:[%s166 + $0x188] sm:$0xff]
      %v225 = vld [vmem:[%s166 + $0x190] sm:$0xff]
      %v226 = vld [vmem:[%s166 + $0x198] sm:$0xff]
      %v227 = vld [vmem:[%s166 + $0x1a0] sm:$0xff]
      %v228 = vld [vmem:[%s166 + $0x1a8] sm:$0xff]
      %v229 = vld [vmem:[%s166 + $0x1b0] sm:$0xff]
      %v230 = vld [vmem:[%s166 + $0x1b8] sm:$0xff]
      %v231 = vld [vmem:[%s166 + $0x1c0] sm:$0xff]
      %v232 = vld [vmem:[%s166 + $0x1c8] sm:$0xff]
      %v233 = vld [vmem:[%s166 + $0x1d0] sm:$0xff]
      %v234 = vld [vmem:[%s166 + $0x1d8] sm:$0xff]
      %v235 = vld [vmem:[%s166 + $0x1e0] sm:$0xff]
      %v236 = vld [vmem:[%s166 + $0x1e8] sm:$0xff]
      %v237 = vld [vmem:[%s166 + $0x1f0] sm:$0xff]
      %v238 = vld [vmem:[%s166 + $0x1f8] sm:$0xff]
      %v239 = vld [vmem:[%s166 + $0x200] sm:$0xff]
      %v240 = vld [vmem:[%s166 + $0x208] sm:$0xff]
      %v241 = vld [vmem:[%s166 + $0x210] sm:$0xff]
      %v242 = vld [vmem:[%s166 + $0x218] sm:$0xff]
      %v243 = vld [vmem:[%s166 + $0x220] sm:$0xff]
      %v244 = vld [vmem:[%s166 + $0x228] sm:$0xff]
      %v245 = vld [vmem:[%s166 + $0x230] sm:$0xff]
      %v246 = vld [vmem:[%s166 + $0x238] sm:$0xff]
      %v247 = vld [vmem:[%s166 + $0x240] sm:$0xff]
      %v248 = vld [vmem:[%s166 + $0x248] sm:$0xff]
      %v249 = vld [vmem:[%s166 + $0x250] sm:$0xff]
      %v250 = vld [vmem:[%s166 + $0x258] sm:$0xff]
      %v251 = vld [vmem:[%s166 + $0x260] sm:$0xff]
      %v252 = vld [vmem:[%s166 + $0x268] sm:$0xff]
      %v253 = vld [vmem:[%s166 + $0x270] sm:$0xff]
      %v254 = vld [vmem:[%s166 + $0x278] sm:$0xff]
      %v255 = vld [vmem:[%s166 + $0x280] sm:$0xff]
      %v256 = vld [vmem:[%s166 + $0x288] sm:$0xff]
      %v257 = vld [vmem:[%s166 + $0x290] sm:$0xff]
      %v258 = vld [vmem:[%s166 + $0x298] sm:$0xff]
      %v259 = vld [vmem:[%s166 + $0x2a0] sm:$0xff]
      %v260 = vld [vmem:[%s166 + $0x2a8] sm:$0xff]
      %v261 = vld [vmem:[%s166 + $0x2b0] sm:$0xff]
      %v262 = vld [vmem:[%s166 + $0x2b8] sm:$0xff]
      %v263 = vld [vmem:[%s166 + $0x2c0] sm:$0xff]
      %v264 = vld [vmem:[%s166 + $0x2c8] sm:$0xff]
      %v265 = vld [vmem:[%s166 + $0x2d0] sm:$0xff]
      %v266 = vld [vmem:[%s166 + $0x2d8] sm:$0xff]
      %v267 = vld [vmem:[%s166 + $0x2e0] sm:$0xff]
      %v268 = vld [vmem:[%s166 + $0x2e8] sm:$0xff]
      %v269 = vld [vmem:[%s166 + $0x2f0] sm:$0xff]
      %v270 = vld [vmem:[%s166 + $0x2f8] sm:$0xff]
      %v271 = vld [vmem:[%s166 + $0x300] sm:$0xff]
      %v272 = vld [vmem:[%s166 + $0x308] sm:$0xff]
      %v273 = vld [vmem:[%s166 + $0x310] sm:$0xff]
      %v274 = vld [vmem:[%s166 + $0x318] sm:$0xff]
      %v275 = vld [vmem:[%s166 + $0x320] sm:$0xff]
      %v276 = vld [vmem:[%s166 + $0x328] sm:$0xff]
      %v277 = vld [vmem:[%s166 + $0x330] sm:$0xff]
      %v278 = vld [vmem:[%s166 + $0x338] sm:$0xff]
      %v279 = vld [vmem:[%s166 + $0x340] sm:$0xff]
      %v280 = vld [vmem:[%s166 + $0x348] sm:$0xff]
      %v281 = vld [vmem:[%s166 + $0x350] sm:$0xff]
      %v282 = vld [vmem:[%s166 + $0x358] sm:$0xff]
      %v283 = vld [vmem:[%s166 + $0x360] sm:$0xff]
      %v284 = vld [vmem:[%s166 + $0x368] sm:$0xff]
      %v285 = vld [vmem:[%s166 + $0x370] sm:$0xff]
      %v286 = vld [vmem:[%s166 + $0x378] sm:$0xff]
      %v287 = vld [vmem:[%s166 + $0x380] sm:$0xff]
      %v288 = vld [vmem:[%s166 + $0x388] sm:$0xff]
      %v289 = vld [vmem:[%s166 + $0x390] sm:$0xff]
      %v290 = vld [vmem:[%s166 + $0x398] sm:$0xff]
      %v291 = vld [vmem:[%s166 + $0x3a0] sm:$0xff]
      %v292 = vld [vmem:[%s166 + $0x3a8] sm:$0xff]
      %v293 = vld [vmem:[%s166 + $0x3b0] sm:$0xff]
      %v294 = vld [vmem:[%s166 + $0x3b8] sm:$0xff]
      %v295 = vld [vmem:[%s166 + $0x3c0] sm:$0xff]
      %v296 = vld [vmem:[%s166 + $0x3c8] sm:$0xff]
      %v297 = vld [vmem:[%s166 + $0x3d0] sm:$0xff]
      %v298 = vld [vmem:[%s166 + $0x3d8] sm:$0xff]
      %v299 = vld [vmem:[%s166 + $0x3e0] sm:$0xff]
      %v300 = vld [vmem:[%s166 + $0x3e8] sm:$0xff]
      %v301 = vld [vmem:[%s166 + $0x3f0] sm:$0xff]
      %v302 = vld [vmem:[%s166 + $0x3f8] sm:$0xff]
      %v303 = vpack.c.bf16 %v176, %v175
      %v304 = vpack.c.bf16 %v178, %v177
      %v305 = vpack.c.bf16 %v180, %v179
      %v306 = vpack.c.bf16 %v182, %v181
      %v307 = vpack.c.bf16 %v184, %v183
      %v308 = vpack.c.bf16 %v186, %v185
      %v309 = vpack.c.bf16 %v188, %v187
      %v310 = vpack.c.bf16 %v190, %v189
      %v311 = vpack.c.bf16 %v192, %v191
      %v312 = vpack.c.bf16 %v194, %v193
      %v313 = vpack.c.bf16 %v196, %v195
      %v314 = vpack.c.bf16 %v198, %v197
      %v315 = vpack.c.bf16 %v200, %v199
      %v316 = vpack.c.bf16 %v202, %v201
      %v317 = vpack.c.bf16 %v204, %v203
      %v318 = vpack.c.bf16 %v206, %v205
      %v319 = vpack.c.bf16 %v208, %v207
      %v320 = vpack.c.bf16 %v210, %v209
      %v321 = vpack.c.bf16 %v212, %v211
      %v322 = vpack.c.bf16 %v214, %v213
      %v323 = vpack.c.bf16 %v216, %v215
      %v324 = vpack.c.bf16 %v218, %v217
      %v325 = vpack.c.bf16 %v220, %v219
      %v326 = vpack.c.bf16 %v222, %v221
      %v327 = vpack.c.bf16 %v224, %v223
      %v328 = vpack.c.bf16 %v226, %v225
      %v329 = vpack.c.bf16 %v228, %v227
      %v330 = vpack.c.bf16 %v230, %v229
      %v331 = vpack.c.bf16 %v232, %v231
      %v332 = vpack.c.bf16 %v234, %v233
      %v333 = vpack.c.bf16 %v236, %v235
      %v334 = vpack.c.bf16 %v238, %v237
      %v335 = vpack.c.bf16 %v240, %v239
      %v336 = vpack.c.bf16 %v242, %v241
      %v337 = vpack.c.bf16 %v244, %v243
      %v338 = vpack.c.bf16 %v246, %v245
      %v339 = vpack.c.bf16 %v248, %v247
      %v340 = vpack.c.bf16 %v250, %v249
      %v341 = vpack.c.bf16 %v252, %v251
      %v342 = vpack.c.bf16 %v254, %v253
      %v343 = vpack.c.bf16 %v256, %v255
      %v344 = vpack.c.bf16 %v258, %v257
      %v345 = vpack.c.bf16 %v260, %v259
      %v346 = vpack.c.bf16 %v262, %v261
      %v347 = vpack.c.bf16 %v264, %v263
      %v348 = vpack.c.bf16 %v266, %v265
      %v349 = vpack.c.bf16 %v268, %v267
      %v350 = vpack.c.bf16 %v270, %v269
      %v351 = vpack.c.bf16 %v272, %v271
      %v352 = vpack.c.bf16 %v274, %v273
      %v353 = vpack.c.bf16 %v276, %v275
      %v354 = vpack.c.bf16 %v278, %v277
      %v355 = vpack.c.bf16 %v280, %v279
      %v356 = vpack.c.bf16 %v282, %v281
      %v357 = vpack.c.bf16 %v284, %v283
      %v358 = vpack.c.bf16 %v286, %v285
      %v359 = vpack.c.bf16 %v288, %v287
      %v360 = vpack.c.bf16 %v290, %v289
      %v361 = vpack.c.bf16 %v292, %v291
      %v362 = vpack.c.bf16 %v294, %v293
      %v363 = vpack.c.bf16 %v296, %v295
      %v364 = vpack.c.bf16 %v298, %v297
      %v365 = vpack.c.bf16 %v300, %v299
      %v366 = vpack.c.bf16 %v302, %v301
      %v367 = vld [vmem:[%s1] sm:$0xf]
      %v368 = vld [vmem:[%s1 + $0x4] sm:$0xf]
      %v369 = vld [vmem:[%s1 + $0x8] sm:$0xf]
      %v370 = vld [vmem:[%s1 + $0xc] sm:$0xf]
      %v371 = vld [vmem:[%s2] sm:$0x1]
      %v373 = vlaneseq
      %v374 = vshrl.u32 %v373, 7
      %v375 = vsub.s32 0, %v374
      %v376 = vrot.slane %v371, %v375
      %v382 = vunpack.c.l.b16 %v367
      %v383 = vunpack.c.l.b16 %v368
      %v384 = vunpack.c.l.b16 %v369
      %v385 = vunpack.c.l.b16 %v370
      %v386 = vpack.c.b16 %v383, %v382
      %v387 = vpack.c.b16 %v385, %v384
      %vm390 = vcmask 261120
      %v392 = vsel %vm390, %v303, 0
      %v395 = vsel %vm390, %v304, 0
      %v398 = vsel %vm390, %v305, 0
      %v401 = vsel %vm390, %v306, 0
      %v404 = vsel %vm390, %v307, 0
      %v407 = vsel %vm390, %v308, 0
      %v410 = vsel %vm390, %v309, 0
      %v413 = vsel %vm390, %v310, 0
      %v416 = vsel %vm390, %v311, 0
      %v419 = vsel %vm390, %v312, 0
      %v422 = vsel %vm390, %v313, 0
      %v425 = vsel %vm390, %v314, 0
      %v428 = vsel %vm390, %v315, 0
      %v431 = vsel %vm390, %v316, 0
      %v434 = vsel %vm390, %v317, 0
      %v437 = vsel %vm390, %v318, 0
      %v440 = vsel %vm390, %v319, 0
      %v443 = vsel %vm390, %v320, 0
      %v446 = vsel %vm390, %v321, 0
      %v449 = vsel %vm390, %v322, 0
      %v452 = vsel %vm390, %v323, 0
      %v455 = vsel %vm390, %v324, 0
      %v458 = vsel %vm390, %v325, 0
      %v461 = vsel %vm390, %v326, 0
      %v464 = vsel %vm390, %v327, 0
      %v467 = vsel %vm390, %v328, 0
      %v470 = vsel %vm390, %v329, 0
      %v473 = vsel %vm390, %v330, 0
      %v476 = vsel %vm390, %v331, 0
      %v479 = vsel %vm390, %v332, 0
      %v482 = vsel %vm390, %v333, 0
      %v485 = vsel %vm390, %v334, 0
      %v488 = vsel %vm390, %v335, 0
      %v491 = vsel %vm390, %v336, 0
      %v494 = vsel %vm390, %v337, 0
      %v497 = vsel %vm390, %v338, 0
      %v500 = vsel %vm390, %v339, 0
      %v503 = vsel %vm390, %v340, 0
      %v506 = vsel %vm390, %v341, 0
      %v509 = vsel %vm390, %v342, 0
      %v512 = vsel %vm390, %v343, 0
      %v515 = vsel %vm390, %v344, 0
      %v518 = vsel %vm390, %v345, 0
      %v521 = vsel %vm390, %v346, 0
      %v524 = vsel %vm390, %v347, 0
      %v527 = vsel %vm390, %v348, 0
      %v530 = vsel %vm390, %v349, 0
      %v533 = vsel %vm390, %v350, 0
      %v536 = vsel %vm390, %v351, 0
      %v539 = vsel %vm390, %v352, 0
      %v542 = vsel %vm390, %v353, 0
      %v545 = vsel %vm390, %v354, 0
      %v548 = vsel %vm390, %v355, 0
      %v551 = vsel %vm390, %v356, 0
      %v554 = vsel %vm390, %v357, 0
      %v557 = vsel %vm390, %v358, 0
      %v560 = vsel %vm390, %v359, 0
      %v563 = vsel %vm390, %v360, 0
      %v566 = vsel %vm390, %v361, 0
      %v569 = vsel %vm390, %v362, 0
      %v572 = vsel %vm390, %v363, 0
      %v575 = vsel %vm390, %v364, 0
      %v578 = vsel %vm390, %v365, 0
      %v581 = vsel %vm390, %v366, 0
      %583 = vmatprep.subr.bf16.mxu0 0
      %584 = vmatpush1.bf16.msra.mxu0 0
      %585 = vmatprep.subr.bf16.mxu0 0
      %586 = vmatpush1.bf16.msra.mxu0 0
      %587 = vmatprep.subr.bf16.mxu0 0
      %588 = vmatpush1.bf16.msra.mxu0 0
      %589 = vmatprep.subr.bf16.mxu0 0
      %590 = vmatpush1.bf16.msra.mxu0 0
      %591 = vmatprep.subr.bf16.mxu0 0
      %592 = vmatpush1.bf16.msra.mxu0 0
      %593 = vmatprep.subr.bf16.mxu0 0
      %594 = vmatpush1.bf16.msra.mxu0 0
      %595 = vmatprep.subr.bf16.mxu0 0
      %596 = vmatpush1.bf16.msra.mxu0 %v387
      %597 = vmatprep.subr.bf16.mxu0 0
      %598 = vmatpush1.bf16.msra.mxu0 %v386
      %599 = vmatprep.subr.bf16.mxu0 0
      %600 = vmatpush2.bf16.msra.mxu0 0
      %601 = vmatprep.subr.bf16.mxu0 0
      %602 = vmatpush2.bf16.msra.mxu0 0
      %603 = vmatprep.subr.bf16.mxu0 0
      %604 = vmatpush2.bf16.msra.mxu0 0
      %605 = vmatprep.subr.bf16.mxu0 0
      %606 = vmatpush2.bf16.msra.mxu0 0
      %607 = vmatprep.subr.bf16.mxu0 0
      %608 = vmatpush2.bf16.msra.mxu0 0
      %609 = vmatprep.subr.bf16.mxu0 0
      %610 = vmatpush2.bf16.msra.mxu0 0
      %611 = vmatprep.subr.bf16.mxu0 0
      %612 = vmatpush2.bf16.msra.mxu0 0
      %613 = vmatprep.subr.bf16.mxu0 0
      %614 = vmatpush2.bf16.msra.mxu0 0
      %615 = vmatprep.mubr.bf16.mxu0 0
      %616 = vmatmul.mubr.bf16.gmra.mxu0 %v392
      %v617 = vpop.f32.mrf.mxu0
      %v618 = vadd.f32 %v376, %v617
      %v619 = vpop.f32.mrf.mxu0
      %v620 = vpop.f32.mrf.mxu0
      %v621 = vadd.f32 %v376, %v620
      %v622 = vpop.f32.mrf.mxu0
      %623 = vmatprep.mubr.bf16.mxu0 0
      %624 = vmatmul.mubr.bf16.gmra.mxu0 %v395
      %v625 = vpop.f32.mrf.mxu0
      %v626 = vadd.f32 %v376, %v625
      %v627 = vpop.f32.mrf.mxu0
      %v628 = vpop.f32.mrf.mxu0
      %v629 = vadd.f32 %v376, %v628
      %v630 = vpop.f32.mrf.mxu0
      %631 = vmatprep.mubr.bf16.mxu0 0
      %632 = vmatmul.mubr.bf16.gmra.mxu0 %v398
      %v633 = vpop.f32.mrf.mxu0
      %v634 = vadd.f32 %v376, %v633
      %v635 = vpop.f32.mrf.mxu0
      %v636 = vpop.f32.mrf.mxu0
      %v637 = vadd.f32 %v376, %v636
      %v638 = vpop.f32.mrf.mxu0
      %639 = vmatprep.mubr.bf16.mxu0 0
      %640 = vmatmul.mubr.bf16.gmra.mxu0 %v401
      %v641 = vpop.f32.mrf.mxu0
      %v642 = vadd.f32 %v376, %v641
      %v643 = vpop.f32.mrf.mxu0
      %v644 = vpop.f32.mrf.mxu0
      %v645 = vadd.f32 %v376, %v644
      %v646 = vpop.f32.mrf.mxu0
      %647 = vmatprep.mubr.bf16.mxu0 0
      %648 = vmatmul.mubr.bf16.gmra.mxu0 %v404
      %v649 = vpop.f32.mrf.mxu0
      %v650 = vadd.f32 %v376, %v649
      %v651 = vpop.f32.mrf.mxu0
      %v652 = vpop.f32.mrf.mxu0
      %v653 = vadd.f32 %v376, %v652
      %v654 = vpop.f32.mrf.mxu0
      %655 = vmatprep.mubr.bf16.mxu0 0
      %656 = vmatmul.mubr.bf16.gmra.mxu0 %v407
      %v657 = vpop.f32.mrf.mxu0
      %v658 = vadd.f32 %v376, %v657
      %v659 = vpop.f32.mrf.mxu0
      %v660 = vpop.f32.mrf.mxu0
      %v661 = vadd.f32 %v376, %v660
      %v662 = vpop.f32.mrf.mxu0
      %663 = vmatprep.mubr.bf16.mxu0 0
      %664 = vmatmul.mubr.bf16.gmra.mxu0 %v410
      %v665 = vpop.f32.mrf.mxu0
      %v666 = vadd.f32 %v376, %v665
      %v667 = vpop.f32.mrf.mxu0
      %v668 = vpop.f32.mrf.mxu0
      %v669 = vadd.f32 %v376, %v668
      %v670 = vpop.f32.mrf.mxu0
      %671 = vmatprep.mubr.bf16.mxu0 0
      %672 = vmatmul.mubr.bf16.gmra.mxu0 %v413
      %v673 = vpop.f32.mrf.mxu0
      %v674 = vadd.f32 %v376, %v673
      %v675 = vpop.f32.mrf.mxu0
      %v676 = vpop.f32.mrf.mxu0
      %v677 = vadd.f32 %v376, %v676
      %v678 = vpop.f32.mrf.mxu0
      %679 = vmatprep.mubr.bf16.mxu0 0
      %680 = vmatmul.mubr.bf16.gmra.mxu0 %v416
      %v681 = vpop.f32.mrf.mxu0
      %v682 = vadd.f32 %v376, %v681
      %v683 = vpop.f32.mrf.mxu0
      %v684 = vpop.f32.mrf.mxu0
      %v685 = vadd.f32 %v376, %v684
      %v686 = vpop.f32.mrf.mxu0
      %687 = vmatprep.mubr.bf16.mxu0 0
      %688 = vmatmul.mubr.bf16.gmra.mxu0 %v419
      %v689 = vpop.f32.mrf.mxu0
      %v690 = vadd.f32 %v376, %v689
      %v691 = vpop.f32.mrf.mxu0
      %v692 = vpop.f32.mrf.mxu0
      %v693 = vadd.f32 %v376, %v692
      %v694 = vpop.f32.mrf.mxu0
      %695 = vmatprep.mubr.bf16.mxu0 0
      %696 = vmatmul.mubr.bf16.gmra.mxu0 %v422
      %v697 = vpop.f32.mrf.mxu0
      %v698 = vadd.f32 %v376, %v697
      %v699 = vpop.f32.mrf.mxu0
      %v700 = vpop.f32.mrf.mxu0
      %v701 = vadd.f32 %v376, %v700
      %v702 = vpop.f32.mrf.mxu0
      %703 = vmatprep.mubr.bf16.mxu0 0
      %704 = vmatmul.mubr.bf16.gmra.mxu0 %v425
      %v705 = vpop.f32.mrf.mxu0
      %v706 = vadd.f32 %v376, %v705
      %v707 = vpop.f32.mrf.mxu0
      %v708 = vpop.f32.mrf.mxu0
      %v709 = vadd.f32 %v376, %v708
      %v710 = vpop.f32.mrf.mxu0
      %711 = vmatprep.mubr.bf16.mxu0 0
      %712 = vmatmul.mubr.bf16.gmra.mxu0 %v428
      %v713 = vpop.f32.mrf.mxu0
      %v714 = vadd.f32 %v376, %v713
      %v715 = vpop.f32.mrf.mxu0
      %v716 = vpop.f32.mrf.mxu0
      %v717 = vadd.f32 %v376, %v716
      %v718 = vpop.f32.mrf.mxu0
      %719 = vmatprep.mubr.bf16.mxu0 0
      %720 = vmatmul.mubr.bf16.gmra.mxu0 %v431
      %v721 = vpop.f32.mrf.mxu0
      %v722 = vadd.f32 %v376, %v721
      %v723 = vpop.f32.mrf.mxu0
      %v724 = vpop.f32.mrf.mxu0
      %v725 = vadd.f32 %v376, %v724
      %v726 = vpop.f32.mrf.mxu0
      %727 = vmatprep.mubr.bf16.mxu0 0
      %728 = vmatmul.mubr.bf16.gmra.mxu0 %v434
      %v729 = vpop.f32.mrf.mxu0
      %v730 = vadd.f32 %v376, %v729
      %v731 = vpop.f32.mrf.mxu0
      %v732 = vpop.f32.mrf.mxu0
      %v733 = vadd.f32 %v376, %v732
      %v734 = vpop.f32.mrf.mxu0
      %735 = vmatprep.mubr.bf16.mxu0 0
      %736 = vmatmul.mubr.bf16.gmra.mxu0 %v437
      %v737 = vpop.f32.mrf.mxu0
      %v738 = vadd.f32 %v376, %v737
      %v739 = vpop.f32.mrf.mxu0
      %v740 = vpop.f32.mrf.mxu0
      %v741 = vadd.f32 %v376, %v740
      %v742 = vpop.f32.mrf.mxu0
      %743 = vmatprep.mubr.bf16.mxu0 0
      %744 = vmatmul.mubr.bf16.gmra.mxu0 %v440
      %v745 = vpop.f32.mrf.mxu0
      %v746 = vadd.f32 %v376, %v745
      %v747 = vpop.f32.mrf.mxu0
      %v748 = vpop.f32.mrf.mxu0
      %v749 = vadd.f32 %v376, %v748
      %v750 = vpop.f32.mrf.mxu0
      %751 = vmatprep.mubr.bf16.mxu0 0
      %752 = vmatmul.mubr.bf16.gmra.mxu0 %v443
      %v753 = vpop.f32.mrf.mxu0
      %v754 = vadd.f32 %v376, %v753
      %v755 = vpop.f32.mrf.mxu0
      %v756 = vpop.f32.mrf.mxu0
      %v757 = vadd.f32 %v376, %v756
      %v758 = vpop.f32.mrf.mxu0
      %759 = vmatprep.mubr.bf16.mxu0 0
      %760 = vmatmul.mubr.bf16.gmra.mxu0 %v446
      %v761 = vpop.f32.mrf.mxu0
      %v762 = vadd.f32 %v376, %v761
      %v763 = vpop.f32.mrf.mxu0
      %v764 = vpop.f32.mrf.mxu0
      %v765 = vadd.f32 %v376, %v764
      %v766 = vpop.f32.mrf.mxu0
      %767 = vmatprep.mubr.bf16.mxu0 0
      %768 = vmatmul.mubr.bf16.gmra.mxu0 %v449
      %v769 = vpop.f32.mrf.mxu0
      %v770 = vadd.f32 %v376, %v769
      %v771 = vpop.f32.mrf.mxu0
      %v772 = vpop.f32.mrf.mxu0
      %v773 = vadd.f32 %v376, %v772
      %v774 = vpop.f32.mrf.mxu0
      %775 = vmatprep.mubr.bf16.mxu0 0
      %776 = vmatmul.mubr.bf16.gmra.mxu0 %v452
      %v777 = vpop.f32.mrf.mxu0
      %v778 = vadd.f32 %v376, %v777
      %v779 = vpop.f32.mrf.mxu0
      %v780 = vpop.f32.mrf.mxu0
      %v781 = vadd.f32 %v376, %v780
      %v782 = vpop.f32.mrf.mxu0
      %783 = vmatprep.mubr.bf16.mxu0 0
      %784 = vmatmul.mubr.bf16.gmra.mxu0 %v455
      %v785 = vpop.f32.mrf.mxu0
      %v786 = vadd.f32 %v376, %v785
      %v787 = vpop.f32.mrf.mxu0
      %v788 = vpop.f32.mrf.mxu0
      %v789 = vadd.f32 %v376, %v788
      %v790 = vpop.f32.mrf.mxu0
      %791 = vmatprep.mubr.bf16.mxu0 0
      %792 = vmatmul.mubr.bf16.gmra.mxu0 %v458
      %v793 = vpop.f32.mrf.mxu0
      %v794 = vadd.f32 %v376, %v793
      %v795 = vpop.f32.mrf.mxu0
      %v796 = vpop.f32.mrf.mxu0
      %v797 = vadd.f32 %v376, %v796
      %v798 = vpop.f32.mrf.mxu0
      %799 = vmatprep.mubr.bf16.mxu0 0
      %800 = vmatmul.mubr.bf16.gmra.mxu0 %v461
      %v801 = vpop.f32.mrf.mxu0
      %v802 = vadd.f32 %v376, %v801
      %v803 = vpop.f32.mrf.mxu0
      %v804 = vpop.f32.mrf.mxu0
      %v805 = vadd.f32 %v376, %v804
      %v806 = vpop.f32.mrf.mxu0
      %807 = vmatprep.mubr.bf16.mxu0 0
      %808 = vmatmul.mubr.bf16.gmra.mxu0 %v464
      %v809 = vpop.f32.mrf.mxu0
      %v810 = vadd.f32 %v376, %v809
      %v811 = vpop.f32.mrf.mxu0
      %v812 = vpop.f32.mrf.mxu0
      %v813 = vadd.f32 %v376, %v812
      %v814 = vpop.f32.mrf.mxu0
      %815 = vmatprep.mubr.bf16.mxu0 0
      %816 = vmatmul.mubr.bf16.gmra.mxu0 %v467
      %v817 = vpop.f32.mrf.mxu0
      %v818 = vadd.f32 %v376, %v817
      %v819 = vpop.f32.mrf.mxu0
      %v820 = vpop.f32.mrf.mxu0
      %v821 = vadd.f32 %v376, %v820
      %v822 = vpop.f32.mrf.mxu0
      %823 = vmatprep.mubr.bf16.mxu0 0
      %824 = vmatmul.mubr.bf16.gmra.mxu0 %v470
      %v825 = vpop.f32.mrf.mxu0
      %v826 = vadd.f32 %v376, %v825
      %v827 = vpop.f32.mrf.mxu0
      %v828 = vpop.f32.mrf.mxu0
      %v829 = vadd.f32 %v376, %v828
      %v830 = vpop.f32.mrf.mxu0
      %831 = vmatprep.mubr.bf16.mxu0 0
      %832 = vmatmul.mubr.bf16.gmra.mxu0 %v473
      %v833 = vpop.f32.mrf.mxu0
      %v834 = vadd.f32 %v376, %v833
      %v835 = vpop.f32.mrf.mxu0
      %v836 = vpop.f32.mrf.mxu0
      %v837 = vadd.f32 %v376, %v836
      %v838 = vpop.f32.mrf.mxu0
      %839 = vmatprep.mubr.bf16.mxu0 0
      %840 = vmatmul.mubr.bf16.gmra.mxu0 %v476
      %v841 = vpop.f32.mrf.mxu0
      %v842 = vadd.f32 %v376, %v841
      %v843 = vpop.f32.mrf.mxu0
      %v844 = vpop.f32.mrf.mxu0
      %v845 = vadd.f32 %v376, %v844
      %v846 = vpop.f32.mrf.mxu0
      %847 = vmatprep.mubr.bf16.mxu0 0
      %848 = vmatmul.mubr.bf16.gmra.mxu0 %v479
      %v849 = vpop.f32.mrf.mxu0
      %v850 = vadd.f32 %v376, %v849
      %v851 = vpop.f32.mrf.mxu0
      %v852 = vpop.f32.mrf.mxu0
      %v853 = vadd.f32 %v376, %v852
      %v854 = vpop.f32.mrf.mxu0
      %855 = vmatprep.mubr.bf16.mxu0 0
      %856 = vmatmul.mubr.bf16.gmra.mxu0 %v482
      %v857 = vpop.f32.mrf.mxu0
      %v858 = vadd.f32 %v376, %v857
      %v859 = vpop.f32.mrf.mxu0
      %v860 = vpop.f32.mrf.mxu0
      %v861 = vadd.f32 %v376, %v860
      %v862 = vpop.f32.mrf.mxu0
      %863 = vmatprep.mubr.bf16.mxu0 0
      %864 = vmatmul.mubr.bf16.gmra.mxu0 %v485
      %v865 = vpop.f32.mrf.mxu0
      %v866 = vadd.f32 %v376, %v865
      %v867 = vpop.f32.mrf.mxu0
      %v868 = vpop.f32.mrf.mxu0
      %v869 = vadd.f32 %v376, %v868
      %v870 = vpop.f32.mrf.mxu0
      %871 = vmatprep.mubr.bf16.mxu0 0
      %872 = vmatmul.mubr.bf16.gmra.mxu0 %v488
      %v873 = vpop.f32.mrf.mxu0
      %v874 = vadd.f32 %v376, %v873
      %v875 = vpop.f32.mrf.mxu0
      %v876 = vpop.f32.mrf.mxu0
      %v877 = vadd.f32 %v376, %v876
      %v878 = vpop.f32.mrf.mxu0
      %879 = vmatprep.mubr.bf16.mxu0 0
      %880 = vmatmul.mubr.bf16.gmra.mxu0 %v491
      %v881 = vpop.f32.mrf.mxu0
      %v882 = vadd.f32 %v376, %v881
      %v883 = vpop.f32.mrf.mxu0
      %v884 = vpop.f32.mrf.mxu0
      %v885 = vadd.f32 %v376, %v884
      %v886 = vpop.f32.mrf.mxu0
      %887 = vmatprep.mubr.bf16.mxu0 0
      %888 = vmatmul.mubr.bf16.gmra.mxu0 %v494
      %v889 = vpop.f32.mrf.mxu0
      %v890 = vadd.f32 %v376, %v889
      %v891 = vpop.f32.mrf.mxu0
      %v892 = vpop.f32.mrf.mxu0
      %v893 = vadd.f32 %v376, %v892
      %v894 = vpop.f32.mrf.mxu0
      %895 = vmatprep.mubr.bf16.mxu0 0
      %896 = vmatmul.mubr.bf16.gmra.mxu0 %v497
      %v897 = vpop.f32.mrf.mxu0
      %v898 = vadd.f32 %v376, %v897
      %v899 = vpop.f32.mrf.mxu0
      %v900 = vpop.f32.mrf.mxu0
      %v901 = vadd.f32 %v376, %v900
      %v902 = vpop.f32.mrf.mxu0
      %903 = vmatprep.mubr.bf16.mxu0 0
      %904 = vmatmul.mubr.bf16.gmra.mxu0 %v500
      %v905 = vpop.f32.mrf.mxu0
      %v906 = vadd.f32 %v376, %v905
      %v907 = vpop.f32.mrf.mxu0
      %v908 = vpop.f32.mrf.mxu0
      %v909 = vadd.f32 %v376, %v908
      %v910 = vpop.f32.mrf.mxu0
      %911 = vmatprep.mubr.bf16.mxu0 0
      %912 = vmatmul.mubr.bf16.gmra.mxu0 %v503
      %v913 = vpop.f32.mrf.mxu0
      %v914 = vadd.f32 %v376, %v913
      %v915 = vpop.f32.mrf.mxu0
      %v916 = vpop.f32.mrf.mxu0
      %v917 = vadd.f32 %v376, %v916
      %v918 = vpop.f32.mrf.mxu0
      %919 = vmatprep.mubr.bf16.mxu0 0
      %920 = vmatmul.mubr.bf16.gmra.mxu0 %v506
      %v921 = vpop.f32.mrf.mxu0
      %v922 = vadd.f32 %v376, %v921
      %v923 = vpop.f32.mrf.mxu0
      %v924 = vpop.f32.mrf.mxu0
      %v925 = vadd.f32 %v376, %v924
      %v926 = vpop.f32.mrf.mxu0
      %927 = vmatprep.mubr.bf16.mxu0 0
      %928 = vmatmul.mubr.bf16.gmra.mxu0 %v509
      %v929 = vpop.f32.mrf.mxu0
      %v930 = vadd.f32 %v376, %v929
      %v931 = vpop.f32.mrf.mxu0
      %v932 = vpop.f32.mrf.mxu0
      %v933 = vadd.f32 %v376, %v932
      %v934 = vpop.f32.mrf.mxu0
      %935 = vmatprep.mubr.bf16.mxu0 0
      %936 = vmatmul.mubr.bf16.gmra.mxu0 %v512
      %v937 = vpop.f32.mrf.mxu0
      %v938 = vadd.f32 %v376, %v937
      %v939 = vpop.f32.mrf.mxu0
      %v940 = vpop.f32.mrf.mxu0
      %v941 = vadd.f32 %v376, %v940
      %v942 = vpop.f32.mrf.mxu0
      %943 = vmatprep.mubr.bf16.mxu0 0
      %944 = vmatmul.mubr.bf16.gmra.mxu0 %v515
      %v945 = vpop.f32.mrf.mxu0
      %v946 = vadd.f32 %v376, %v945
      %v947 = vpop.f32.mrf.mxu0
      %v948 = vpop.f32.mrf.mxu0
      %v949 = vadd.f32 %v376, %v948
      %v950 = vpop.f32.mrf.mxu0
      %951 = vmatprep.mubr.bf16.mxu0 0
      %952 = vmatmul.mubr.bf16.gmra.mxu0 %v518
      %v953 = vpop.f32.mrf.mxu0
      %v954 = vadd.f32 %v376, %v953
      %v955 = vpop.f32.mrf.mxu0
      %v956 = vpop.f32.mrf.mxu0
      %v957 = vadd.f32 %v376, %v956
      %v958 = vpop.f32.mrf.mxu0
      %959 = vmatprep.mubr.bf16.mxu0 0
      %960 = vmatmul.mubr.bf16.gmra.mxu0 %v521
      %v961 = vpop.f32.mrf.mxu0
      %v962 = vadd.f32 %v376, %v961
      %v963 = vpop.f32.mrf.mxu0
      %v964 = vpop.f32.mrf.mxu0
      %v965 = vadd.f32 %v376, %v964
      %v966 = vpop.f32.mrf.mxu0
      %967 = vmatprep.mubr.bf16.mxu0 0
      %968 = vmatmul.mubr.bf16.gmra.mxu0 %v524
      %v969 = vpop.f32.mrf.mxu0
      %v970 = vadd.f32 %v376, %v969
      %v971 = vpop.f32.mrf.mxu0
      %v972 = vpop.f32.mrf.mxu0
      %v973 = vadd.f32 %v376, %v972
      %v974 = vpop.f32.mrf.mxu0
      %975 = vmatprep.mubr.bf16.mxu0 0
      %976 = vmatmul.mubr.bf16.gmra.mxu0 %v527
      %v977 = vpop.f32.mrf.mxu0
      %v978 = vadd.f32 %v376, %v977
      %v979 = vpop.f32.mrf.mxu0
      %v980 = vpop.f32.mrf.mxu0
      %v981 = vadd.f32 %v376, %v980
      %v982 = vpop.f32.mrf.mxu0
      %983 = vmatprep.mubr.bf16.mxu0 0
      %984 = vmatmul.mubr.bf16.gmra.mxu0 %v530
      %v985 = vpop.f32.mrf.mxu0
      %v986 = vadd.f32 %v376, %v985
      %v987 = vpop.f32.mrf.mxu0
      %v988 = vpop.f32.mrf.mxu0
      %v989 = vadd.f32 %v376, %v988
      %v990 = vpop.f32.mrf.mxu0
      %991 = vmatprep.mubr.bf16.mxu0 0
      %992 = vmatmul.mubr.bf16.gmra.mxu0 %v533
      %v993 = vpop.f32.mrf.mxu0
      %v994 = vadd.f32 %v376, %v993
      %v995 = vpop.f32.mrf.mxu0
      %v996 = vpop.f32.mrf.mxu0
      %v997 = vadd.f32 %v376, %v996
      %v998 = vpop.f32.mrf.mxu0
      %999 = vmatprep.mubr.bf16.mxu0 0
      %1000 = vmatmul.mubr.bf16.gmra.mxu0 %v536
      %v1001 = vpop.f32.mrf.mxu0
      %v1002 = vadd.f32 %v376, %v1001
      %v1003 = vpop.f32.mrf.mxu0
      %v1004 = vpop.f32.mrf.mxu0
      %v1005 = vadd.f32 %v376, %v1004
      %v1006 = vpop.f32.mrf.mxu0
      %1007 = vmatprep.mubr.bf16.mxu0 0
      %1008 = vmatmul.mubr.bf16.gmra.mxu0 %v539
      %v1009 = vpop.f32.mrf.mxu0
      %v1010 = vadd.f32 %v376, %v1009
      %v1011 = vpop.f32.mrf.mxu0
      %v1012 = vpop.f32.mrf.mxu0
      %v1013 = vadd.f32 %v376, %v1012
      %v1014 = vpop.f32.mrf.mxu0
      %1015 = vmatprep.mubr.bf16.mxu0 0
      %1016 = vmatmul.mubr.bf16.gmra.mxu0 %v542
      %v1017 = vpop.f32.mrf.mxu0
      %v1018 = vadd.f32 %v376, %v1017
      %v1019 = vpop.f32.mrf.mxu0
      %v1020 = vpop.f32.mrf.mxu0
      %v1021 = vadd.f32 %v376, %v1020
      %v1022 = vpop.f32.mrf.mxu0
      %1023 = vmatprep.mubr.bf16.mxu0 0
      %1024 = vmatmul.mubr.bf16.gmra.mxu0 %v545
      %v1025 = vpop.f32.mrf.mxu0
      %v1026 = vadd.f32 %v376, %v1025
      %v1027 = vpop.f32.mrf.mxu0
      %v1028 = vpop.f32.mrf.mxu0
      %v1029 = vadd.f32 %v376, %v1028
      %v1030 = vpop.f32.mrf.mxu0
      %1031 = vmatprep.mubr.bf16.mxu0 0
      %1032 = vmatmul.mubr.bf16.gmra.mxu0 %v548
      %v1033 = vpop.f32.mrf.mxu0
      %v1034 = vadd.f32 %v376, %v1033
      %v1035 = vpop.f32.mrf.mxu0
      %v1036 = vpop.f32.mrf.mxu0
      %v1037 = vadd.f32 %v376, %v1036
      %v1038 = vpop.f32.mrf.mxu0
      %1039 = vmatprep.mubr.bf16.mxu0 0
      %1040 = vmatmul.mubr.bf16.gmra.mxu0 %v551
      %v1041 = vpop.f32.mrf.mxu0
      %v1042 = vadd.f32 %v376, %v1041
      %v1043 = vpop.f32.mrf.mxu0
      %v1044 = vpop.f32.mrf.mxu0
      %v1045 = vadd.f32 %v376, %v1044
      %v1046 = vpop.f32.mrf.mxu0
      %1047 = vmatprep.mubr.bf16.mxu0 0
      %1048 = vmatmul.mubr.bf16.gmra.mxu0 %v554
      %v1049 = vpop.f32.mrf.mxu0
      %v1050 = vadd.f32 %v376, %v1049
      %v1051 = vpop.f32.mrf.mxu0
      %v1052 = vpop.f32.mrf.mxu0
      %v1053 = vadd.f32 %v376, %v1052
      %v1054 = vpop.f32.mrf.mxu0
      %1055 = vmatprep.mubr.bf16.mxu0 0
      %1056 = vmatmul.mubr.bf16.gmra.mxu0 %v557
      %v1057 = vpop.f32.mrf.mxu0
      %v1058 = vadd.f32 %v376, %v1057
      %v1059 = vpop.f32.mrf.mxu0
      %v1060 = vpop.f32.mrf.mxu0
      %v1061 = vadd.f32 %v376, %v1060
      %v1062 = vpop.f32.mrf.mxu0
      %1063 = vmatprep.mubr.bf16.mxu0 0
      %1064 = vmatmul.mubr.bf16.gmra.mxu0 %v560
      %v1065 = vpop.f32.mrf.mxu0
      %v1066 = vadd.f32 %v376, %v1065
      %v1067 = vpop.f32.mrf.mxu0
      %v1068 = vpop.f32.mrf.mxu0
      %v1069 = vadd.f32 %v376, %v1068
      %v1070 = vpop.f32.mrf.mxu0
      %1071 = vmatprep.mubr.bf16.mxu0 0
      %1072 = vmatmul.mubr.bf16.gmra.mxu0 %v563
      %v1073 = vpop.f32.mrf.mxu0
      %v1074 = vadd.f32 %v376, %v1073
      %v1075 = vpop.f32.mrf.mxu0
      %v1076 = vpop.f32.mrf.mxu0
      %v1077 = vadd.f32 %v376, %v1076
      %v1078 = vpop.f32.mrf.mxu0
      %1079 = vmatprep.mubr.bf16.mxu0 0
      %1080 = vmatmul.mubr.bf16.gmra.mxu0 %v566
      %v1081 = vpop.f32.mrf.mxu0
      %v1082 = vadd.f32 %v376, %v1081
      %v1083 = vpop.f32.mrf.mxu0
      %v1084 = vpop.f32.mrf.mxu0
      %v1085 = vadd.f32 %v376, %v1084
      %v1086 = vpop.f32.mrf.mxu0
      %1087 = vmatprep.mubr.bf16.mxu0 0
      %1088 = vmatmul.mubr.bf16.gmra.mxu0 %v569
      %v1089 = vpop.f32.mrf.mxu0
      %v1090 = vadd.f32 %v376, %v1089
      %v1091 = vpop.f32.mrf.mxu0
      %v1092 = vpop.f32.mrf.mxu0
      %v1093 = vadd.f32 %v376, %v1092
      %v1094 = vpop.f32.mrf.mxu0
      %1095 = vmatprep.mubr.bf16.mxu0 0
      %1096 = vmatmul.mubr.bf16.gmra.mxu0 %v572
      %v1097 = vpop.f32.mrf.mxu0
      %v1098 = vadd.f32 %v376, %v1097
      %v1099 = vpop.f32.mrf.mxu0
      %v1100 = vpop.f32.mrf.mxu0
      %v1101 = vadd.f32 %v376, %v1100
      %v1102 = vpop.f32.mrf.mxu0
      %1103 = vmatprep.mubr.bf16.mxu0 0
      %1104 = vmatmul.mubr.bf16.gmra.mxu0 %v575
      %v1105 = vpop.f32.mrf.mxu0
      %v1106 = vadd.f32 %v376, %v1105
      %v1107 = vpop.f32.mrf.mxu0
      %v1108 = vpop.f32.mrf.mxu0
      %v1109 = vadd.f32 %v376, %v1108
      %v1110 = vpop.f32.mrf.mxu0
      %1111 = vmatprep.mubr.bf16.mxu0 0
      %1112 = vmatmul.mubr.bf16.gmra.mxu0 %v578
      %v1113 = vpop.f32.mrf.mxu0
      %v1114 = vadd.f32 %v376, %v1113
      %v1115 = vpop.f32.mrf.mxu0
      %v1116 = vpop.f32.mrf.mxu0
      %v1117 = vadd.f32 %v376, %v1116
      %v1118 = vpop.f32.mrf.mxu0
      %1119 = vmatprep.mubr.bf16.mxu0 0
      %1120 = vmatmul.mubr.bf16.gmra.mxu0 %v581
      %v1121 = vpop.f32.mrf.mxu0
      %v1122 = vadd.f32 %v376, %v1121
      %v1123 = vpop.f32.mrf.mxu0
      %v1124 = vpop.f32.mrf.mxu0
      %v1125 = vadd.f32 %v376, %v1124
      %v1126 = vpop.f32.mrf.mxu0
      %1127 = vdwg.mxu0
      %v1128 = vsub.f32 0.0, %v618
      %v1129 = vsub.f32 0.0, %v621
      %v1130 = vsub.f32 0.0, %v626
      %v1131 = vsub.f32 0.0, %v629
      %v1132 = vsub.f32 0.0, %v634
      %v1133 = vsub.f32 0.0, %v637
      %v1134 = vsub.f32 0.0, %v642
      %v1135 = vsub.f32 0.0, %v645
      %v1136 = vsub.f32 0.0, %v650
      %v1137 = vsub.f32 0.0, %v653
      %v1138 = vsub.f32 0.0, %v658
      %v1139 = vsub.f32 0.0, %v661
      %v1140 = vsub.f32 0.0, %v666
      %v1141 = vsub.f32 0.0, %v669
      %v1142 = vsub.f32 0.0, %v674
      %v1143 = vsub.f32 0.0, %v677
      %v1144 = vsub.f32 0.0, %v682
      %v1145 = vsub.f32 0.0, %v685
      %v1146 = vsub.f32 0.0, %v690
      %v1147 = vsub.f32 0.0, %v693
      %v1148 = vsub.f32 0.0, %v698
      %v1149 = vsub.f32 0.0, %v701
      %v1150 = vsub.f32 0.0, %v706
      %v1151 = vsub.f32 0.0, %v709
      %v1152 = vsub.f32 0.0, %v714
      %v1153 = vsub.f32 0.0, %v717
      %v1154 = vsub.f32 0.0, %v722
      %v1155 = vsub.f32 0.0, %v725
      %v1156 = vsub.f32 0.0, %v730
      %v1157 = vsub.f32 0.0, %v733
      %v1158 = vsub.f32 0.0, %v738
      %v1159 = vsub.f32 0.0, %v741
      %v1160 = vsub.f32 0.0, %v746
      %v1161 = vsub.f32 0.0, %v749
      %v1162 = vsub.f32 0.0, %v754
      %v1163 = vsub.f32 0.0, %v757
      %v1164 = vsub.f32 0.0, %v762
      %v1165 = vsub.f32 0.0, %v765
      %v1166 = vsub.f32 0.0, %v770
      %v1167 = vsub.f32 0.0, %v773
      %v1168 = vsub.f32 0.0, %v778
      %v1169 = vsub.f32 0.0, %v781
      %v1170 = vsub.f32 0.0, %v786
      %v1171 = vsub.f32 0.0, %v789
      %v1172 = vsub.f32 0.0, %v794
      %v1173 = vsub.f32 0.0, %v797
      %v1174 = vsub.f32 0.0, %v802
      %v1175 = vsub.f32 0.0, %v805
      %v1176 = vsub.f32 0.0, %v810
      %v1177 = vsub.f32 0.0, %v813
      %v1178 = vsub.f32 0.0, %v818
      %v1179 = vsub.f32 0.0, %v821
      %v1180 = vsub.f32 0.0, %v826
      %v1181 = vsub.f32 0.0, %v829
      %v1182 = vsub.f32 0.0, %v834
      %v1183 = vsub.f32 0.0, %v837
      %v1184 = vsub.f32 0.0, %v842
      %v1185 = vsub.f32 0.0, %v845
      %v1186 = vsub.f32 0.0, %v850
      %v1187 = vsub.f32 0.0, %v853
      %v1188 = vsub.f32 0.0, %v858
      %v1189 = vsub.f32 0.0, %v861
      %v1190 = vsub.f32 0.0, %v866
      %v1191 = vsub.f32 0.0, %v869
      %v1192 = vsub.f32 0.0, %v874
      %v1193 = vsub.f32 0.0, %v877
      %v1194 = vsub.f32 0.0, %v882
      %v1195 = vsub.f32 0.0, %v885
      %v1196 = vsub.f32 0.0, %v890
      %v1197 = vsub.f32 0.0, %v893
      %v1198 = vsub.f32 0.0, %v898
      %v1199 = vsub.f32 0.0, %v901
      %v1200 = vsub.f32 0.0, %v906
      %v1201 = vsub.f32 0.0, %v909
      %v1202 = vsub.f32 0.0, %v914
      %v1203 = vsub.f32 0.0, %v917
      %v1204 = vsub.f32 0.0, %v922
      %v1205 = vsub.f32 0.0, %v925
      %v1206 = vsub.f32 0.0, %v930
      %v1207 = vsub.f32 0.0, %v933
      %v1208 = vsub.f32 0.0, %v938
      %v1209 = vsub.f32 0.0, %v941
      %v1210 = vsub.f32 0.0, %v946
      %v1211 = vsub.f32 0.0, %v949
      %v1212 = vsub.f32 0.0, %v954
      %v1213 = vsub.f32 0.0, %v957
      %v1214 = vsub.f32 0.0, %v962
      %v1215 = vsub.f32 0.0, %v965
      %v1216 = vsub.f32 0.0, %v970
      %v1217 = vsub.f32 0.0, %v973
      %v1218 = vsub.f32 0.0, %v978
      %v1219 = vsub.f32 0.0, %v981
      %v1220 = vsub.f32 0.0, %v986
      %v1221 = vsub.f32 0.0, %v989
      %v1222 = vsub.f32 0.0, %v994
      %v1223 = vsub.f32 0.0, %v997
      %v1224 = vsub.f32 0.0, %v1002
      %v1225 = vsub.f32 0.0, %v1005
      %v1226 = vsub.f32 0.0, %v1010
      %v1227 = vsub.f32 0.0, %v1013
      %v1228 = vsub.f32 0.0, %v1018
      %v1229 = vsub.f32 0.0, %v1021
      %v1230 = vsub.f32 0.0, %v1026
      %v1231 = vsub.f32 0.0, %v1029
      %v1232 = vsub.f32 0.0, %v1034
      %v1233 = vsub.f32 0.0, %v1037
      %v1234 = vsub.f32 0.0, %v1042
      %v1235 = vsub.f32 0.0, %v1045
      %v1236 = vsub.f32 0.0, %v1050
      %v1237 = vsub.f32 0.0, %v1053
      %v1238 = vsub.f32 0.0, %v1058
      %v1239 = vsub.f32 0.0, %v1061
      %v1240 = vsub.f32 0.0, %v1066
      %v1241 = vsub.f32 0.0, %v1069
      %v1242 = vsub.f32 0.0, %v1074
      %v1243 = vsub.f32 0.0, %v1077
      %v1244 = vsub.f32 0.0, %v1082
      %v1245 = vsub.f32 0.0, %v1085
      %v1246 = vsub.f32 0.0, %v1090
      %v1247 = vsub.f32 0.0, %v1093
      %v1248 = vsub.f32 0.0, %v1098
      %v1249 = vsub.f32 0.0, %v1101
      %v1250 = vsub.f32 0.0, %v1106
      %v1251 = vsub.f32 0.0, %v1109
      %v1252 = vsub.f32 0.0, %v1114
      %v1253 = vsub.f32 0.0, %v1117
      %v1254 = vsub.f32 0.0, %v1122
      %v1255 = vsub.f32 0.0, %v1125
      %v1256 = vmin.f32 %v1128, 60.0
      %v1257 = vmin.f32 %v1129, 60.0
      %v1258 = vmin.f32 %v1130, 60.0
      %v1259 = vmin.f32 %v1131, 60.0
      %v1260 = vmin.f32 %v1132, 60.0
      %v1261 = vmin.f32 %v1133, 60.0
      %v1262 = vmin.f32 %v1134, 60.0
      %v1263 = vmin.f32 %v1135, 60.0
      %v1264 = vmin.f32 %v1136, 60.0
      %v1265 = vmin.f32 %v1137, 60.0
      %v1266 = vmin.f32 %v1138, 60.0
      %v1267 = vmin.f32 %v1139, 60.0
      %v1268 = vmin.f32 %v1140, 60.0
      %v1269 = vmin.f32 %v1141, 60.0
      %v1270 = vmin.f32 %v1142, 60.0
      %v1271 = vmin.f32 %v1143, 60.0
      %v1272 = vmin.f32 %v1144, 60.0
      %v1273 = vmin.f32 %v1145, 60.0
      %v1274 = vmin.f32 %v1146, 60.0
      %v1275 = vmin.f32 %v1147, 60.0
      %v1276 = vmin.f32 %v1148, 60.0
      %v1277 = vmin.f32 %v1149, 60.0
      %v1278 = vmin.f32 %v1150, 60.0
      %v1279 = vmin.f32 %v1151, 60.0
      %v1280 = vmin.f32 %v1152, 60.0
      %v1281 = vmin.f32 %v1153, 60.0
      %v1282 = vmin.f32 %v1154, 60.0
      %v1283 = vmin.f32 %v1155, 60.0
      %v1284 = vmin.f32 %v1156, 60.0
      %v1285 = vmin.f32 %v1157, 60.0
      %v1286 = vmin.f32 %v1158, 60.0
      %v1287 = vmin.f32 %v1159, 60.0
      %v1288 = vmin.f32 %v1160, 60.0
      %v1289 = vmin.f32 %v1161, 60.0
      %v1290 = vmin.f32 %v1162, 60.0
      %v1291 = vmin.f32 %v1163, 60.0
      %v1292 = vmin.f32 %v1164, 60.0
      %v1293 = vmin.f32 %v1165, 60.0
      %v1294 = vmin.f32 %v1166, 60.0
      %v1295 = vmin.f32 %v1167, 60.0
      %v1296 = vmin.f32 %v1168, 60.0
      %v1297 = vmin.f32 %v1169, 60.0
      %v1298 = vmin.f32 %v1170, 60.0
      %v1299 = vmin.f32 %v1171, 60.0
      %v1300 = vmin.f32 %v1172, 60.0
      %v1301 = vmin.f32 %v1173, 60.0
      %v1302 = vmin.f32 %v1174, 60.0
      %v1303 = vmin.f32 %v1175, 60.0
      %v1304 = vmin.f32 %v1176, 60.0
      %v1305 = vmin.f32 %v1177, 60.0
      %v1306 = vmin.f32 %v1178, 60.0
      %v1307 = vmin.f32 %v1179, 60.0
      %v1308 = vmin.f32 %v1180, 60.0
      %v1309 = vmin.f32 %v1181, 60.0
      %v1310 = vmin.f32 %v1182, 60.0
      %v1311 = vmin.f32 %v1183, 60.0
      %v1312 = vmin.f32 %v1184, 60.0
      %v1313 = vmin.f32 %v1185, 60.0
      %v1314 = vmin.f32 %v1186, 60.0
      %v1315 = vmin.f32 %v1187, 60.0
      %v1316 = vmin.f32 %v1188, 60.0
      %v1317 = vmin.f32 %v1189, 60.0
      %v1318 = vmin.f32 %v1190, 60.0
      %v1319 = vmin.f32 %v1191, 60.0
      %v1320 = vmin.f32 %v1192, 60.0
      %v1321 = vmin.f32 %v1193, 60.0
      %v1322 = vmin.f32 %v1194, 60.0
      %v1323 = vmin.f32 %v1195, 60.0
      %v1324 = vmin.f32 %v1196, 60.0
      %v1325 = vmin.f32 %v1197, 60.0
      %v1326 = vmin.f32 %v1198, 60.0
      %v1327 = vmin.f32 %v1199, 60.0
      %v1328 = vmin.f32 %v1200, 60.0
      %v1329 = vmin.f32 %v1201, 60.0
      %v1330 = vmin.f32 %v1202, 60.0
      %v1331 = vmin.f32 %v1203, 60.0
      %v1332 = vmin.f32 %v1204, 60.0
      %v1333 = vmin.f32 %v1205, 60.0
      %v1334 = vmin.f32 %v1206, 60.0
      %v1335 = vmin.f32 %v1207, 60.0
      %v1336 = vmin.f32 %v1208, 60.0
      %v1337 = vmin.f32 %v1209, 60.0
      %v1338 = vmin.f32 %v1210, 60.0
      %v1339 = vmin.f32 %v1211, 60.0
      %v1340 = vmin.f32 %v1212, 60.0
      %v1341 = vmin.f32 %v1213, 60.0
      %v1342 = vmin.f32 %v1214, 60.0
      %v1343 = vmin.f32 %v1215, 60.0
      %v1344 = vmin.f32 %v1216, 60.0
      %v1345 = vmin.f32 %v1217, 60.0
      %v1346 = vmin.f32 %v1218, 60.0
      %v1347 = vmin.f32 %v1219, 60.0
      %v1348 = vmin.f32 %v1220, 60.0
      %v1349 = vmin.f32 %v1221, 60.0
      %v1350 = vmin.f32 %v1222, 60.0
      %v1351 = vmin.f32 %v1223, 60.0
      %v1352 = vmin.f32 %v1224, 60.0
      %v1353 = vmin.f32 %v1225, 60.0
      %v1354 = vmin.f32 %v1226, 60.0
      %v1355 = vmin.f32 %v1227, 60.0
      %v1356 = vmin.f32 %v1228, 60.0
      %v1357 = vmin.f32 %v1229, 60.0
      %v1358 = vmin.f32 %v1230, 60.0
      %v1359 = vmin.f32 %v1231, 60.0
      %v1360 = vmin.f32 %v1232, 60.0
      %v1361 = vmin.f32 %v1233, 60.0
      %v1362 = vmin.f32 %v1234, 60.0
      %v1363 = vmin.f32 %v1235, 60.0
      %v1364 = vmin.f32 %v1236, 60.0
      %v1365 = vmin.f32 %v1237, 60.0
      %v1366 = vmin.f32 %v1238, 60.0
      %v1367 = vmin.f32 %v1239, 60.0
      %v1368 = vmin.f32 %v1240, 60.0
      %v1369 = vmin.f32 %v1241, 60.0
      %v1370 = vmin.f32 %v1242, 60.0
      %v1371 = vmin.f32 %v1243, 60.0
      %v1372 = vmin.f32 %v1244, 60.0
      %v1373 = vmin.f32 %v1245, 60.0
      %v1374 = vmin.f32 %v1246, 60.0
      %v1375 = vmin.f32 %v1247, 60.0
      %v1376 = vmin.f32 %v1248, 60.0
      %v1377 = vmin.f32 %v1249, 60.0
      %v1378 = vmin.f32 %v1250, 60.0
      %v1379 = vmin.f32 %v1251, 60.0
      %v1380 = vmin.f32 %v1252, 60.0
      %v1381 = vmin.f32 %v1253, 60.0
      %v1382 = vmin.f32 %v1254, 60.0
      %v1383 = vmin.f32 %v1255, 60.0
      %v1384 = vmul.f32 %v1256, 1.442695
      %v1385 = vpow.pop %v1384
      %v1386 = vmul.f32 %v1257, 1.442695
      %v1387 = vpow.pop %v1386
      %v1388 = vmul.f32 %v1258, 1.442695
      %v1389 = vpow.pop %v1388
      %v1390 = vmul.f32 %v1259, 1.442695
      %v1391 = vpow.pop %v1390
      %v1392 = vmul.f32 %v1260, 1.442695
      %v1393 = vpow.pop %v1392
      %v1394 = vmul.f32 %v1261, 1.442695
      %v1395 = vpow.pop %v1394
      %v1396 = vmul.f32 %v1262, 1.442695
      %v1397 = vpow.pop %v1396
      %v1398 = vmul.f32 %v1263, 1.442695
      %v1399 = vpow.pop %v1398
      %v1400 = vmul.f32 %v1264, 1.442695
      %v1401 = vpow.pop %v1400
      %v1402 = vmul.f32 %v1265, 1.442695
      %v1403 = vpow.pop %v1402
      %v1404 = vmul.f32 %v1266, 1.442695
      %v1405 = vpow.pop %v1404
      %v1406 = vmul.f32 %v1267, 1.442695
      %v1407 = vpow.pop %v1406
      %v1408 = vmul.f32 %v1268, 1.442695
      %v1409 = vpow.pop %v1408
      %v1410 = vmul.f32 %v1269, 1.442695
      %v1411 = vpow.pop %v1410
      %v1412 = vmul.f32 %v1270, 1.442695
      %v1413 = vpow.pop %v1412
      %v1414 = vmul.f32 %v1271, 1.442695
      %v1415 = vpow.pop %v1414
      %v1416 = vmul.f32 %v1272, 1.442695
      %v1417 = vpow.pop %v1416
      %v1418 = vmul.f32 %v1273, 1.442695
      %v1419 = vpow.pop %v1418
      %v1420 = vmul.f32 %v1274, 1.442695
      %v1421 = vpow.pop %v1420
      %v1422 = vmul.f32 %v1275, 1.442695
      %v1423 = vpow.pop %v1422
      %v1424 = vmul.f32 %v1276, 1.442695
      %v1425 = vpow.pop %v1424
      %v1426 = vmul.f32 %v1277, 1.442695
      %v1427 = vpow.pop %v1426
      %v1428 = vmul.f32 %v1278, 1.442695
      %v1429 = vpow.pop %v1428
      %v1430 = vmul.f32 %v1279, 1.442695
      %v1431 = vpow.pop %v1430
      %v1432 = vmul.f32 %v1280, 1.442695
      %v1433 = vpow.pop %v1432
      %v1434 = vmul.f32 %v1281, 1.442695
      %v1435 = vpow.pop %v1434
      %v1436 = vmul.f32 %v1282, 1.442695
      %v1437 = vpow.pop %v1436
      %v1438 = vmul.f32 %v1283, 1.442695
      %v1439 = vpow.pop %v1438
      %v1440 = vmul.f32 %v1284, 1.442695
      %v1441 = vpow.pop %v1440
      %v1442 = vmul.f32 %v1285, 1.442695
      %v1443 = vpow.pop %v1442
      %v1444 = vmul.f32 %v1286, 1.442695
      %v1445 = vpow.pop %v1444
      %v1446 = vmul.f32 %v1287, 1.442695
      %v1447 = vpow.pop %v1446
      %v1448 = vmul.f32 %v1288, 1.442695
      %v1449 = vpow.pop %v1448
      %v1450 = vmul.f32 %v1289, 1.442695
      %v1451 = vpow.pop %v1450
      %v1452 = vmul.f32 %v1290, 1.442695
      %v1453 = vpow.pop %v1452
      %v1454 = vmul.f32 %v1291, 1.442695
      %v1455 = vpow.pop %v1454
      %v1456 = vmul.f32 %v1292, 1.442695
      %v1457 = vpow.pop %v1456
      %v1458 = vmul.f32 %v1293, 1.442695
      %v1459 = vpow.pop %v1458
      %v1460 = vmul.f32 %v1294, 1.442695
      %v1461 = vpow.pop %v1460
      %v1462 = vmul.f32 %v1295, 1.442695
      %v1463 = vpow.pop %v1462
      %v1464 = vmul.f32 %v1296, 1.442695
      %v1465 = vpow.pop %v1464
      %v1466 = vmul.f32 %v1297, 1.442695
      %v1467 = vpow.pop %v1466
      %v1468 = vmul.f32 %v1298, 1.442695
      %v1469 = vpow.pop %v1468
      %v1470 = vmul.f32 %v1299, 1.442695
      %v1471 = vpow.pop %v1470
      %v1472 = vmul.f32 %v1300, 1.442695
      %v1473 = vpow.pop %v1472
      %v1474 = vmul.f32 %v1301, 1.442695
      %v1475 = vpow.pop %v1474
      %v1476 = vmul.f32 %v1302, 1.442695
      %v1477 = vpow.pop %v1476
      %v1478 = vmul.f32 %v1303, 1.442695
      %v1479 = vpow.pop %v1478
      %v1480 = vmul.f32 %v1304, 1.442695
      %v1481 = vpow.pop %v1480
      %v1482 = vmul.f32 %v1305, 1.442695
      %v1483 = vpow.pop %v1482
      %v1484 = vmul.f32 %v1306, 1.442695
      %v1485 = vpow.pop %v1484
      %v1486 = vmul.f32 %v1307, 1.442695
      %v1487 = vpow.pop %v1486
      %v1488 = vmul.f32 %v1308, 1.442695
      %v1489 = vpow.pop %v1488
      %v1490 = vmul.f32 %v1309, 1.442695
      %v1491 = vpow.pop %v1490
      %v1492 = vmul.f32 %v1310, 1.442695
      %v1493 = vpow.pop %v1492
      %v1494 = vmul.f32 %v1311, 1.442695
      %v1495 = vpow.pop %v1494
      %v1496 = vmul.f32 %v1312, 1.442695
      %v1497 = vpow.pop %v1496
      %v1498 = vmul.f32 %v1313, 1.442695
      %v1499 = vpow.pop %v1498
      %v1500 = vmul.f32 %v1314, 1.442695
      %v1501 = vpow.pop %v1500
      %v1502 = vmul.f32 %v1315, 1.442695
      %v1503 = vpow.pop %v1502
      %v1504 = vmul.f32 %v1316, 1.442695
      %v1505 = vpow.pop %v1504
      %v1506 = vmul.f32 %v1317, 1.442695
      %v1507 = vpow.pop %v1506
      %v1508 = vmul.f32 %v1318, 1.442695
      %v1509 = vpow.pop %v1508
      %v1510 = vmul.f32 %v1319, 1.442695
      %v1511 = vpow.pop %v1510
      %v1512 = vmul.f32 %v1320, 1.442695
      %v1513 = vpow.pop %v1512
      %v1514 = vmul.f32 %v1321, 1.442695
      %v1515 = vpow.pop %v1514
      %v1516 = vmul.f32 %v1322, 1.442695
      %v1517 = vpow.pop %v1516
      %v1518 = vmul.f32 %v1323, 1.442695
      %v1519 = vpow.pop %v1518
      %v1520 = vmul.f32 %v1324, 1.442695
      %v1521 = vpow.pop %v1520
      %v1522 = vmul.f32 %v1325, 1.442695
      %v1523 = vpow.pop %v1522
      %v1524 = vmul.f32 %v1326, 1.442695
      %v1525 = vpow.pop %v1524
      %v1526 = vmul.f32 %v1327, 1.442695
      %v1527 = vpow.pop %v1526
      %v1528 = vmul.f32 %v1328, 1.442695
      %v1529 = vpow.pop %v1528
      %v1530 = vmul.f32 %v1329, 1.442695
      %v1531 = vpow.pop %v1530
      %v1532 = vmul.f32 %v1330, 1.442695
      %v1533 = vpow.pop %v1532
      %v1534 = vmul.f32 %v1331, 1.442695
      %v1535 = vpow.pop %v1534
      %v1536 = vmul.f32 %v1332, 1.442695
      %v1537 = vpow.pop %v1536
      %v1538 = vmul.f32 %v1333, 1.442695
      %v1539 = vpow.pop %v1538
      %v1540 = vmul.f32 %v1334, 1.442695
      %v1541 = vpow.pop %v1540
      %v1542 = vmul.f32 %v1335, 1.442695
      %v1543 = vpow.pop %v1542
      %v1544 = vmul.f32 %v1336, 1.442695
      %v1545 = vpow.pop %v1544
      %v1546 = vmul.f32 %v1337, 1.442695
      %v1547 = vpow.pop %v1546
      %v1548 = vmul.f32 %v1338, 1.442695
      %v1549 = vpow.pop %v1548
      %v1550 = vmul.f32 %v1339, 1.442695
      %v1551 = vpow.pop %v1550
      %v1552 = vmul.f32 %v1340, 1.442695
      %v1553 = vpow.pop %v1552
      %v1554 = vmul.f32 %v1341, 1.442695
      %v1555 = vpow.pop %v1554
      %v1556 = vmul.f32 %v1342, 1.442695
      %v1557 = vpow.pop %v1556
      %v1558 = vmul.f32 %v1343, 1.442695
      %v1559 = vpow.pop %v1558
      %v1560 = vmul.f32 %v1344, 1.442695
      %v1561 = vpow.pop %v1560
      %v1562 = vmul.f32 %v1345, 1.442695
      %v1563 = vpow.pop %v1562
      %v1564 = vmul.f32 %v1346, 1.442695
      %v1565 = vpow.pop %v1564
      %v1566 = vmul.f32 %v1347, 1.442695
      %v1567 = vpow.pop %v1566
      %v1568 = vmul.f32 %v1348, 1.442695
      %v1569 = vpow.pop %v1568
      %v1570 = vmul.f32 %v1349, 1.442695
      %v1571 = vpow.pop %v1570
      %v1572 = vmul.f32 %v1350, 1.442695
      %v1573 = vpow.pop %v1572
      %v1574 = vmul.f32 %v1351, 1.442695
      %v1575 = vpow.pop %v1574
      %v1576 = vmul.f32 %v1352, 1.442695
      %v1577 = vpow.pop %v1576
      %v1578 = vmul.f32 %v1353, 1.442695
      %v1579 = vpow.pop %v1578
      %v1580 = vmul.f32 %v1354, 1.442695
      %v1581 = vpow.pop %v1580
      %v1582 = vmul.f32 %v1355, 1.442695
      %v1583 = vpow.pop %v1582
      %v1584 = vmul.f32 %v1356, 1.442695
      %v1585 = vpow.pop %v1584
      %v1586 = vmul.f32 %v1357, 1.442695
      %v1587 = vpow.pop %v1586
      %v1588 = vmul.f32 %v1358, 1.442695
      %v1589 = vpow.pop %v1588
      %v1590 = vmul.f32 %v1359, 1.442695
      %v1591 = vpow.pop %v1590
      %v1592 = vmul.f32 %v1360, 1.442695
      %v1593 = vpow.pop %v1592
      %v1594 = vmul.f32 %v1361, 1.442695
      %v1595 = vpow.pop %v1594
      %v1596 = vmul.f32 %v1362, 1.442695
      %v1597 = vpow.pop %v1596
      %v1598 = vmul.f32 %v1363, 1.442695
      %v1599 = vpow.pop %v1598
      %v1600 = vmul.f32 %v1364, 1.442695
      %v1601 = vpow.pop %v1600
      %v1602 = vmul.f32 %v1365, 1.442695
      %v1603 = vpow.pop %v1602
      %v1604 = vmul.f32 %v1366, 1.442695
      %v1605 = vpow.pop %v1604
      %v1606 = vmul.f32 %v1367, 1.442695
      %v1607 = vpow.pop %v1606
      %v1608 = vmul.f32 %v1368, 1.442695
      %v1609 = vpow.pop %v1608
      %v1610 = vmul.f32 %v1369, 1.442695
      %v1611 = vpow.pop %v1610
      %v1612 = vmul.f32 %v1370, 1.442695
      %v1613 = vpow.pop %v1612
      %v1614 = vmul.f32 %v1371, 1.442695
      %v1615 = vpow.pop %v1614
      %v1616 = vmul.f32 %v1372, 1.442695
      %v1617 = vpow.pop %v1616
      %v1618 = vmul.f32 %v1373, 1.442695
      %v1619 = vpow.pop %v1618
      %v1620 = vmul.f32 %v1374, 1.442695
      %v1621 = vpow.pop %v1620
      %v1622 = vmul.f32 %v1375, 1.442695
      %v1623 = vpow.pop %v1622
      %v1624 = vmul.f32 %v1376, 1.442695
      %v1625 = vpow.pop %v1624
      %v1626 = vmul.f32 %v1377, 1.442695
      %v1627 = vpow.pop %v1626
      %v1628 = vmul.f32 %v1378, 1.442695
      %v1629 = vpow.pop %v1628
      %v1630 = vmul.f32 %v1379, 1.442695
      %v1631 = vpow.pop %v1630
      %v1632 = vmul.f32 %v1380, 1.442695
      %v1633 = vpow.pop %v1632
      %v1634 = vmul.f32 %v1381, 1.442695
      %v1635 = vpow.pop %v1634
      %v1636 = vmul.f32 %v1382, 1.442695
      %v1637 = vpow.pop %v1636
      %v1638 = vmul.f32 %v1383, 1.442695
      %v1639 = vpow.pop %v1638
      %v1640 = vadd.f32 %v1385, 1.0
      %v1641 = vadd.f32 %v1387, 1.0
      %v1642 = vadd.f32 %v1389, 1.0
      %v1643 = vadd.f32 %v1391, 1.0
      %v1644 = vadd.f32 %v1393, 1.0
      %v1645 = vadd.f32 %v1395, 1.0
      %v1646 = vadd.f32 %v1397, 1.0
      %v1647 = vadd.f32 %v1399, 1.0
      %v1648 = vadd.f32 %v1401, 1.0
      %v1649 = vadd.f32 %v1403, 1.0
      %v1650 = vadd.f32 %v1405, 1.0
      %v1651 = vadd.f32 %v1407, 1.0
      %v1652 = vadd.f32 %v1409, 1.0
      %v1653 = vadd.f32 %v1411, 1.0
      %v1654 = vadd.f32 %v1413, 1.0
      %v1655 = vadd.f32 %v1415, 1.0
      %v1656 = vadd.f32 %v1417, 1.0
      %v1657 = vadd.f32 %v1419, 1.0
      %v1658 = vadd.f32 %v1421, 1.0
      %v1659 = vadd.f32 %v1423, 1.0
      %v1660 = vadd.f32 %v1425, 1.0
      %v1661 = vadd.f32 %v1427, 1.0
      %v1662 = vadd.f32 %v1429, 1.0
      %v1663 = vadd.f32 %v1431, 1.0
      %v1664 = vadd.f32 %v1433, 1.0
      %v1665 = vadd.f32 %v1435, 1.0
      %v1666 = vadd.f32 %v1437, 1.0
      %v1667 = vadd.f32 %v1439, 1.0
      %v1668 = vadd.f32 %v1441, 1.0
      %v1669 = vadd.f32 %v1443, 1.0
      %v1670 = vadd.f32 %v1445, 1.0
      %v1671 = vadd.f32 %v1447, 1.0
      %v1672 = vadd.f32 %v1449, 1.0
      %v1673 = vadd.f32 %v1451, 1.0
      %v1674 = vadd.f32 %v1453, 1.0
      %v1675 = vadd.f32 %v1455, 1.0
      %v1676 = vadd.f32 %v1457, 1.0
      %v1677 = vadd.f32 %v1459, 1.0
      %v1678 = vadd.f32 %v1461, 1.0
      %v1679 = vadd.f32 %v1463, 1.0
      %v1680 = vadd.f32 %v1465, 1.0
      %v1681 = vadd.f32 %v1467, 1.0
      %v1682 = vadd.f32 %v1469, 1.0
      %v1683 = vadd.f32 %v1471, 1.0
      %v1684 = vadd.f32 %v1473, 1.0
      %v1685 = vadd.f32 %v1475, 1.0
      %v1686 = vadd.f32 %v1477, 1.0
      %v1687 = vadd.f32 %v1479, 1.0
      %v1688 = vadd.f32 %v1481, 1.0
      %v1689 = vadd.f32 %v1483, 1.0
      %v1690 = vadd.f32 %v1485, 1.0
      %v1691 = vadd.f32 %v1487, 1.0
      %v1692 = vadd.f32 %v1489, 1.0
      %v1693 = vadd.f32 %v1491, 1.0
      %v1694 = vadd.f32 %v1493, 1.0
      %v1695 = vadd.f32 %v1495, 1.0
      %v1696 = vadd.f32 %v1497, 1.0
      %v1697 = vadd.f32 %v1499, 1.0
      %v1698 = vadd.f32 %v1501, 1.0
      %v1699 = vadd.f32 %v1503, 1.0
      %v1700 = vadd.f32 %v1505, 1.0
      %v1701 = vadd.f32 %v1507, 1.0
      %v1702 = vadd.f32 %v1509, 1.0
      %v1703 = vadd.f32 %v1511, 1.0
      %v1704 = vadd.f32 %v1513, 1.0
      %v1705 = vadd.f32 %v1515, 1.0
      %v1706 = vadd.f32 %v1517, 1.0
      %v1707 = vadd.f32 %v1519, 1.0
      %v1708 = vadd.f32 %v1521, 1.0
      %v1709 = vadd.f32 %v1523, 1.0
      %v1710 = vadd.f32 %v1525, 1.0
      %v1711 = vadd.f32 %v1527, 1.0
      %v1712 = vadd.f32 %v1529, 1.0
      %v1713 = vadd.f32 %v1531, 1.0
      %v1714 = vadd.f32 %v1533, 1.0
      %v1715 = vadd.f32 %v1535, 1.0
      %v1716 = vadd.f32 %v1537, 1.0
      %v1717 = vadd.f32 %v1539, 1.0
      %v1718 = vadd.f32 %v1541, 1.0
      %v1719 = vadd.f32 %v1543, 1.0
      %v1720 = vadd.f32 %v1545, 1.0
      %v1721 = vadd.f32 %v1547, 1.0
      %v1722 = vadd.f32 %v1549, 1.0
      %v1723 = vadd.f32 %v1551, 1.0
      %v1724 = vadd.f32 %v1553, 1.0
      %v1725 = vadd.f32 %v1555, 1.0
      %v1726 = vadd.f32 %v1557, 1.0
      %v1727 = vadd.f32 %v1559, 1.0
      %v1728 = vadd.f32 %v1561, 1.0
      %v1729 = vadd.f32 %v1563, 1.0
      %v1730 = vadd.f32 %v1565, 1.0
      %v1731 = vadd.f32 %v1567, 1.0
      %v1732 = vadd.f32 %v1569, 1.0
      %v1733 = vadd.f32 %v1571, 1.0
      %v1734 = vadd.f32 %v1573, 1.0
      %v1735 = vadd.f32 %v1575, 1.0
      %v1736 = vadd.f32 %v1577, 1.0
      %v1737 = vadd.f32 %v1579, 1.0
      %v1738 = vadd.f32 %v1581, 1.0
      %v1739 = vadd.f32 %v1583, 1.0
      %v1740 = vadd.f32 %v1585, 1.0
      %v1741 = vadd.f32 %v1587, 1.0
      %v1742 = vadd.f32 %v1589, 1.0
      %v1743 = vadd.f32 %v1591, 1.0
      %v1744 = vadd.f32 %v1593, 1.0
      %v1745 = vadd.f32 %v1595, 1.0
      %v1746 = vadd.f32 %v1597, 1.0
      %v1747 = vadd.f32 %v1599, 1.0
      %v1748 = vadd.f32 %v1601, 1.0
      %v1749 = vadd.f32 %v1603, 1.0
      %v1750 = vadd.f32 %v1605, 1.0
      %v1751 = vadd.f32 %v1607, 1.0
      %v1752 = vadd.f32 %v1609, 1.0
      %v1753 = vadd.f32 %v1611, 1.0
      %v1754 = vadd.f32 %v1613, 1.0
      %v1755 = vadd.f32 %v1615, 1.0
      %v1756 = vadd.f32 %v1617, 1.0
      %v1757 = vadd.f32 %v1619, 1.0
      %v1758 = vadd.f32 %v1621, 1.0
      %v1759 = vadd.f32 %v1623, 1.0
      %v1760 = vadd.f32 %v1625, 1.0
      %v1761 = vadd.f32 %v1627, 1.0
      %v1762 = vadd.f32 %v1629, 1.0
      %v1763 = vadd.f32 %v1631, 1.0
      %v1764 = vadd.f32 %v1633, 1.0
      %v1765 = vadd.f32 %v1635, 1.0
      %v1766 = vadd.f32 %v1637, 1.0
      %v1767 = vadd.f32 %v1639, 1.0
      %v1768 = vrcp.pop %v1640
      %v1769 = vrcp.pop %v1641
      %v1770 = vrcp.pop %v1642
      %v1771 = vrcp.pop %v1643
      %v1772 = vrcp.pop %v1644
      %v1773 = vrcp.pop %v1645
      %v1774 = vrcp.pop %v1646
      %v1775 = vrcp.pop %v1647
      %v1776 = vrcp.pop %v1648
      %v1777 = vrcp.pop %v1649
      %v1778 = vrcp.pop %v1650
      %v1779 = vrcp.pop %v1651
      %v1780 = vrcp.pop %v1652
      %v1781 = vrcp.pop %v1653
      %v1782 = vrcp.pop %v1654
      %v1783 = vrcp.pop %v1655
      %v1784 = vrcp.pop %v1656
      %v1785 = vrcp.pop %v1657
      %v1786 = vrcp.pop %v1658
      %v1787 = vrcp.pop %v1659
      %v1788 = vrcp.pop %v1660
      %v1789 = vrcp.pop %v1661
      %v1790 = vrcp.pop %v1662
      %v1791 = vrcp.pop %v1663
      %v1792 = vrcp.pop %v1664
      %v1793 = vrcp.pop %v1665
      %v1794 = vrcp.pop %v1666
      %v1795 = vrcp.pop %v1667
      %v1796 = vrcp.pop %v1668
      %v1797 = vrcp.pop %v1669
      %v1798 = vrcp.pop %v1670
      %v1799 = vrcp.pop %v1671
      %v1800 = vrcp.pop %v1672
      %v1801 = vrcp.pop %v1673
      %v1802 = vrcp.pop %v1674
      %v1803 = vrcp.pop %v1675
      %v1804 = vrcp.pop %v1676
      %v1805 = vrcp.pop %v1677
      %v1806 = vrcp.pop %v1678
      %v1807 = vrcp.pop %v1679
      %v1808 = vrcp.pop %v1680
      %v1809 = vrcp.pop %v1681
      %v1810 = vrcp.pop %v1682
      %v1811 = vrcp.pop %v1683
      %v1812 = vrcp.pop %v1684
      %v1813 = vrcp.pop %v1685
      %v1814 = vrcp.pop %v1686
      %v1815 = vrcp.pop %v1687
      %v1816 = vrcp.pop %v1688
      %v1817 = vrcp.pop %v1689
      %v1818 = vrcp.pop %v1690
      %v1819 = vrcp.pop %v1691
      %v1820 = vrcp.pop %v1692
      %v1821 = vrcp.pop %v1693
      %v1822 = vrcp.pop %v1694
      %v1823 = vrcp.pop %v1695
      %v1824 = vrcp.pop %v1696
      %v1825 = vrcp.pop %v1697
      %v1826 = vrcp.pop %v1698
      %v1827 = vrcp.pop %v1699
      %v1828 = vrcp.pop %v1700
      %v1829 = vrcp.pop %v1701
      %v1830 = vrcp.pop %v1702
      %v1831 = vrcp.pop %v1703
      %v1832 = vrcp.pop %v1704
      %v1833 = vrcp.pop %v1705
      %v1834 = vrcp.pop %v1706
      %v1835 = vrcp.pop %v1707
      %v1836 = vrcp.pop %v1708
      %v1837 = vrcp.pop %v1709
      %v1838 = vrcp.pop %v1710
      %v1839 = vrcp.pop %v1711
      %v1840 = vrcp.pop %v1712
      %v1841 = vrcp.pop %v1713
      %v1842 = vrcp.pop %v1714
      %v1843 = vrcp.pop %v1715
      %v1844 = vrcp.pop %v1716
      %v1845 = vrcp.pop %v1717
      %v1846 = vrcp.pop %v1718
      %v1847 = vrcp.pop %v1719
      %v1848 = vrcp.pop %v1720
      %v1849 = vrcp.pop %v1721
      %v1850 = vrcp.pop %v1722
      %v1851 = vrcp.pop %v1723
      %v1852 = vrcp.pop %v1724
      %v1853 = vrcp.pop %v1725
      %v1854 = vrcp.pop %v1726
      %v1855 = vrcp.pop %v1727
      %v1856 = vrcp.pop %v1728
      %v1857 = vrcp.pop %v1729
      %v1858 = vrcp.pop %v1730
      %v1859 = vrcp.pop %v1731
      %v1860 = vrcp.pop %v1732
      %v1861 = vrcp.pop %v1733
      %v1862 = vrcp.pop %v1734
      %v1863 = vrcp.pop %v1735
      %v1864 = vrcp.pop %v1736
      %v1865 = vrcp.pop %v1737
      %v1866 = vrcp.pop %v1738
      %v1867 = vrcp.pop %v1739
      %v1868 = vrcp.pop %v1740
      %v1869 = vrcp.pop %v1741
      %v1870 = vrcp.pop %v1742
      %v1871 = vrcp.pop %v1743
      %v1872 = vrcp.pop %v1744
      %v1873 = vrcp.pop %v1745
      %v1874 = vrcp.pop %v1746
      %v1875 = vrcp.pop %v1747
      %v1876 = vrcp.pop %v1748
      %v1877 = vrcp.pop %v1749
      %v1878 = vrcp.pop %v1750
      %v1879 = vrcp.pop %v1751
      %v1880 = vrcp.pop %v1752
      %v1881 = vrcp.pop %v1753
      %v1882 = vrcp.pop %v1754
      %v1883 = vrcp.pop %v1755
      %v1884 = vrcp.pop %v1756
      %v1885 = vrcp.pop %v1757
      %v1886 = vrcp.pop %v1758
      %v1887 = vrcp.pop %v1759
      %v1888 = vrcp.pop %v1760
      %v1889 = vrcp.pop %v1761
      %v1890 = vrcp.pop %v1762
      %v1891 = vrcp.pop %v1763
      %v1892 = vrcp.pop %v1764
      %v1893 = vrcp.pop %v1765
      %v1894 = vrcp.pop %v1766
      %v1895 = vrcp.pop %v1767
      %v1896 = vmul.f32 %v618, %v1768
      %v1897 = vmul.f32 %v621, %v1769
      %v1898 = vmul.f32 %v626, %v1770
      %v1899 = vmul.f32 %v629, %v1771
      %v1900 = vmul.f32 %v634, %v1772
      %v1901 = vmul.f32 %v637, %v1773
      %v1902 = vmul.f32 %v642, %v1774
      %v1903 = vmul.f32 %v645, %v1775
      %v1904 = vmul.f32 %v650, %v1776
      %v1905 = vmul.f32 %v653, %v1777
      %v1906 = vmul.f32 %v658, %v1778
      %v1907 = vmul.f32 %v661, %v1779
      %v1908 = vmul.f32 %v666, %v1780
      %v1909 = vmul.f32 %v669, %v1781
      %v1910 = vmul.f32 %v674, %v1782
      %v1911 = vmul.f32 %v677, %v1783
      %v1912 = vmul.f32 %v682, %v1784
      %v1913 = vmul.f32 %v685, %v1785
      %v1914 = vmul.f32 %v690, %v1786
      %v1915 = vmul.f32 %v693, %v1787
      %v1916 = vmul.f32 %v698, %v1788
      %v1917 = vmul.f32 %v701, %v1789
      %v1918 = vmul.f32 %v706, %v1790
      %v1919 = vmul.f32 %v709, %v1791
      %v1920 = vmul.f32 %v714, %v1792
      %v1921 = vmul.f32 %v717, %v1793
      %v1922 = vmul.f32 %v722, %v1794
      %v1923 = vmul.f32 %v725, %v1795
      %v1924 = vmul.f32 %v730, %v1796
      %v1925 = vmul.f32 %v733, %v1797
      %v1926 = vmul.f32 %v738, %v1798
      %v1927 = vmul.f32 %v741, %v1799
      %v1928 = vmul.f32 %v746, %v1800
      %v1929 = vmul.f32 %v749, %v1801
      %v1930 = vmul.f32 %v754, %v1802
      %v1931 = vmul.f32 %v757, %v1803
      %v1932 = vmul.f32 %v762, %v1804
      %v1933 = vmul.f32 %v765, %v1805
      %v1934 = vmul.f32 %v770, %v1806
      %v1935 = vmul.f32 %v773, %v1807
      %v1936 = vmul.f32 %v778, %v1808
      %v1937 = vmul.f32 %v781, %v1809
      %v1938 = vmul.f32 %v786, %v1810
      %v1939 = vmul.f32 %v789, %v1811
      %v1940 = vmul.f32 %v794, %v1812
      %v1941 = vmul.f32 %v797, %v1813
      %v1942 = vmul.f32 %v802, %v1814
      %v1943 = vmul.f32 %v805, %v1815
      %v1944 = vmul.f32 %v810, %v1816
      %v1945 = vmul.f32 %v813, %v1817
      %v1946 = vmul.f32 %v818, %v1818
      %v1947 = vmul.f32 %v821, %v1819
      %v1948 = vmul.f32 %v826, %v1820
      %v1949 = vmul.f32 %v829, %v1821
      %v1950 = vmul.f32 %v834, %v1822
      %v1951 = vmul.f32 %v837, %v1823
      %v1952 = vmul.f32 %v842, %v1824
      %v1953 = vmul.f32 %v845, %v1825
      %v1954 = vmul.f32 %v850, %v1826
      %v1955 = vmul.f32 %v853, %v1827
      %v1956 = vmul.f32 %v858, %v1828
      %v1957 = vmul.f32 %v861, %v1829
      %v1958 = vmul.f32 %v866, %v1830
      %v1959 = vmul.f32 %v869, %v1831
      %v1960 = vmul.f32 %v874, %v1832
      %v1961 = vmul.f32 %v877, %v1833
      %v1962 = vmul.f32 %v882, %v1834
      %v1963 = vmul.f32 %v885, %v1835
      %v1964 = vmul.f32 %v890, %v1836
      %v1965 = vmul.f32 %v893, %v1837
      %v1966 = vmul.f32 %v898, %v1838
      %v1967 = vmul.f32 %v901, %v1839
      %v1968 = vmul.f32 %v906, %v1840
      %v1969 = vmul.f32 %v909, %v1841
      %v1970 = vmul.f32 %v914, %v1842
      %v1971 = vmul.f32 %v917, %v1843
      %v1972 = vmul.f32 %v922, %v1844
      %v1973 = vmul.f32 %v925, %v1845
      %v1974 = vmul.f32 %v930, %v1846
      %v1975 = vmul.f32 %v933, %v1847
      %v1976 = vmul.f32 %v938, %v1848
      %v1977 = vmul.f32 %v941, %v1849
      %v1978 = vmul.f32 %v946, %v1850
      %v1979 = vmul.f32 %v949, %v1851
      %v1980 = vmul.f32 %v954, %v1852
      %v1981 = vmul.f32 %v957, %v1853
      %v1982 = vmul.f32 %v962, %v1854
      %v1983 = vmul.f32 %v965, %v1855
      %v1984 = vmul.f32 %v970, %v1856
      %v1985 = vmul.f32 %v973, %v1857
      %v1986 = vmul.f32 %v978, %v1858
      %v1987 = vmul.f32 %v981, %v1859
      %v1988 = vmul.f32 %v986, %v1860
      %v1989 = vmul.f32 %v989, %v1861
      %v1990 = vmul.f32 %v994, %v1862
      %v1991 = vmul.f32 %v997, %v1863
      %v1992 = vmul.f32 %v1002, %v1864
      %v1993 = vmul.f32 %v1005, %v1865
      %v1994 = vmul.f32 %v1010, %v1866
      %v1995 = vmul.f32 %v1013, %v1867
      %v1996 = vmul.f32 %v1018, %v1868
      %v1997 = vmul.f32 %v1021, %v1869
      %v1998 = vmul.f32 %v1026, %v1870
      %v1999 = vmul.f32 %v1029, %v1871
      %v2000 = vmul.f32 %v1034, %v1872
      %v2001 = vmul.f32 %v1037, %v1873
      %v2002 = vmul.f32 %v1042, %v1874
      %v2003 = vmul.f32 %v1045, %v1875
      %v2004 = vmul.f32 %v1050, %v1876
      %v2005 = vmul.f32 %v1053, %v1877
      %v2006 = vmul.f32 %v1058, %v1878
      %v2007 = vmul.f32 %v1061, %v1879
      %v2008 = vmul.f32 %v1066, %v1880
      %v2009 = vmul.f32 %v1069, %v1881
      %v2010 = vmul.f32 %v1074, %v1882
      %v2011 = vmul.f32 %v1077, %v1883
      %v2012 = vmul.f32 %v1082, %v1884
      %v2013 = vmul.f32 %v1085, %v1885
      %v2014 = vmul.f32 %v1090, %v1886
      %v2015 = vmul.f32 %v1093, %v1887
      %v2016 = vmul.f32 %v1098, %v1888
      %v2017 = vmul.f32 %v1101, %v1889
      %v2018 = vmul.f32 %v1106, %v1890
      %v2019 = vmul.f32 %v1109, %v1891
      %v2020 = vmul.f32 %v1114, %v1892
      %v2021 = vmul.f32 %v1117, %v1893
      %v2022 = vmul.f32 %v1122, %v1894
      %v2023 = vmul.f32 %v1125, %v1895
      %2024 = vst.msk [vmem:[%s172] sm:$0xff] %vm390, %v1896
      %2025 = vst.msk [vmem:[%s172 + $0x8] sm:$0xff] %vm390, %v1897
      %2026 = vst.msk [vmem:[%s172 + $0x10] sm:$0xff] %vm390, %v1898
      %2027 = vst.msk [vmem:[%s172 + $0x18] sm:$0xff] %vm390, %v1899
      %2028 = vst.msk [vmem:[%s172 + $0x20] sm:$0xff] %vm390, %v1900
      %2029 = vst.msk [vmem:[%s172 + $0x28] sm:$0xff] %vm390, %v1901
      %2030 = vst.msk [vmem:[%s172 + $0x30] sm:$0xff] %vm390, %v1902
      %2031 = vst.msk [vmem:[%s172 + $0x38] sm:$0xff] %vm390, %v1903
      %2032 = vst.msk [vmem:[%s172 + $0x40] sm:$0xff] %vm390, %v1904
      %2033 = vst.msk [vmem:[%s172 + $0x48] sm:$0xff] %vm390, %v1905
      %2034 = vst.msk [vmem:[%s172 + $0x50] sm:$0xff] %vm390, %v1906
      %2035 = vst.msk [vmem:[%s172 + $0x58] sm:$0xff] %vm390, %v1907
      %2036 = vst.msk [vmem:[%s172 + $0x60] sm:$0xff] %vm390, %v1908
      %2037 = vst.msk [vmem:[%s172 + $0x68] sm:$0xff] %vm390, %v1909
      %2038 = vst.msk [vmem:[%s172 + $0x70] sm:$0xff] %vm390, %v1910
      %2039 = vst.msk [vmem:[%s172 + $0x78] sm:$0xff] %vm390, %v1911
      %2040 = vst.msk [vmem:[%s172 + $0x80] sm:$0xff] %vm390, %v1912
      %2041 = vst.msk [vmem:[%s172 + $0x88] sm:$0xff] %vm390, %v1913
      %2042 = vst.msk [vmem:[%s172 + $0x90] sm:$0xff] %vm390, %v1914
      %2043 = vst.msk [vmem:[%s172 + $0x98] sm:$0xff] %vm390, %v1915
      %2044 = vst.msk [vmem:[%s172 + $0xa0] sm:$0xff] %vm390, %v1916
      %2045 = vst.msk [vmem:[%s172 + $0xa8] sm:$0xff] %vm390, %v1917
      %2046 = vst.msk [vmem:[%s172 + $0xb0] sm:$0xff] %vm390, %v1918
      %2047 = vst.msk [vmem:[%s172 + $0xb8] sm:$0xff] %vm390, %v1919
      %2048 = vst.msk [vmem:[%s172 + $0xc0] sm:$0xff] %vm390, %v1920
      %2049 = vst.msk [vmem:[%s172 + $0xc8] sm:$0xff] %vm390, %v1921
      %2050 = vst.msk [vmem:[%s172 + $0xd0] sm:$0xff] %vm390, %v1922
      %2051 = vst.msk [vmem:[%s172 + $0xd8] sm:$0xff] %vm390, %v1923
      %2052 = vst.msk [vmem:[%s172 + $0xe0] sm:$0xff] %vm390, %v1924
      %2053 = vst.msk [vmem:[%s172 + $0xe8] sm:$0xff] %vm390, %v1925
      %2054 = vst.msk [vmem:[%s172 + $0xf0] sm:$0xff] %vm390, %v1926
      %2055 = vst.msk [vmem:[%s172 + $0xf8] sm:$0xff] %vm390, %v1927
      %2056 = vst.msk [vmem:[%s172 + $0x100] sm:$0xff] %vm390, %v1928
      %2057 = vst.msk [vmem:[%s172 + $0x108] sm:$0xff] %vm390, %v1929
      %2058 = vst.msk [vmem:[%s172 + $0x110] sm:$0xff] %vm390, %v1930
      %2059 = vst.msk [vmem:[%s172 + $0x118] sm:$0xff] %vm390, %v1931
      %2060 = vst.msk [vmem:[%s172 + $0x120] sm:$0xff] %vm390, %v1932
      %2061 = vst.msk [vmem:[%s172 + $0x128] sm:$0xff] %vm390, %v1933
      %2062 = vst.msk [vmem:[%s172 + $0x130] sm:$0xff] %vm390, %v1934
      %2063 = vst.msk [vmem:[%s172 + $0x138] sm:$0xff] %vm390, %v1935
      %2064 = vst.msk [vmem:[%s172 + $0x140] sm:$0xff] %vm390, %v1936
      %2065 = vst.msk [vmem:[%s172 + $0x148] sm:$0xff] %vm390, %v1937
      %2066 = vst.msk [vmem:[%s172 + $0x150] sm:$0xff] %vm390, %v1938
      %2067 = vst.msk [vmem:[%s172 + $0x158] sm:$0xff] %vm390, %v1939
      %2068 = vst.msk [vmem:[%s172 + $0x160] sm:$0xff] %vm390, %v1940
      %2069 = vst.msk [vmem:[%s172 + $0x168] sm:$0xff] %vm390, %v1941
      %2070 = vst.msk [vmem:[%s172 + $0x170] sm:$0xff] %vm390, %v1942
      %2071 = vst.msk [vmem:[%s172 + $0x178] sm:$0xff] %vm390, %v1943
      %2072 = vst.msk [vmem:[%s172 + $0x180] sm:$0xff] %vm390, %v1944
      %2073 = vst.msk [vmem:[%s172 + $0x188] sm:$0xff] %vm390, %v1945
      %2074 = vst.msk [vmem:[%s172 + $0x190] sm:$0xff] %vm390, %v1946
      %2075 = vst.msk [vmem:[%s172 + $0x198] sm:$0xff] %vm390, %v1947
      %2076 = vst.msk [vmem:[%s172 + $0x1a0] sm:$0xff] %vm390, %v1948
      %2077 = vst.msk [vmem:[%s172 + $0x1a8] sm:$0xff] %vm390, %v1949
      %2078 = vst.msk [vmem:[%s172 + $0x1b0] sm:$0xff] %vm390, %v1950
      %2079 = vst.msk [vmem:[%s172 + $0x1b8] sm:$0xff] %vm390, %v1951
      %2080 = vst.msk [vmem:[%s172 + $0x1c0] sm:$0xff] %vm390, %v1952
      %2081 = vst.msk [vmem:[%s172 + $0x1c8] sm:$0xff] %vm390, %v1953
      %2082 = vst.msk [vmem:[%s172 + $0x1d0] sm:$0xff] %vm390, %v1954
      %2083 = vst.msk [vmem:[%s172 + $0x1d8] sm:$0xff] %vm390, %v1955
      %2084 = vst.msk [vmem:[%s172 + $0x1e0] sm:$0xff] %vm390, %v1956
      %2085 = vst.msk [vmem:[%s172 + $0x1e8] sm:$0xff] %vm390, %v1957
      %2086 = vst.msk [vmem:[%s172 + $0x1f0] sm:$0xff] %vm390, %v1958
      %2087 = vst.msk [vmem:[%s172 + $0x1f8] sm:$0xff] %vm390, %v1959
      %2088 = vst.msk [vmem:[%s172 + $0x200] sm:$0xff] %vm390, %v1960
      %2089 = vst.msk [vmem:[%s172 + $0x208] sm:$0xff] %vm390, %v1961
      %2090 = vst.msk [vmem:[%s172 + $0x210] sm:$0xff] %vm390, %v1962
      %2091 = vst.msk [vmem:[%s172 + $0x218] sm:$0xff] %vm390, %v1963
      %2092 = vst.msk [vmem:[%s172 + $0x220] sm:$0xff] %vm390, %v1964
      %2093 = vst.msk [vmem:[%s172 + $0x228] sm:$0xff] %vm390, %v1965
      %2094 = vst.msk [vmem:[%s172 + $0x230] sm:$0xff] %vm390, %v1966
      %2095 = vst.msk [vmem:[%s172 + $0x238] sm:$0xff] %vm390, %v1967
      %2096 = vst.msk [vmem:[%s172 + $0x240] sm:$0xff] %vm390, %v1968
      %2097 = vst.msk [vmem:[%s172 + $0x248] sm:$0xff] %vm390, %v1969
      %2098 = vst.msk [vmem:[%s172 + $0x250] sm:$0xff] %vm390, %v1970
      %2099 = vst.msk [vmem:[%s172 + $0x258] sm:$0xff] %vm390, %v1971
      %2100 = vst.msk [vmem:[%s172 + $0x260] sm:$0xff] %vm390, %v1972
      %2101 = vst.msk [vmem:[%s172 + $0x268] sm:$0xff] %vm390, %v1973
      %2102 = vst.msk [vmem:[%s172 + $0x270] sm:$0xff] %vm390, %v1974
      %2103 = vst.msk [vmem:[%s172 + $0x278] sm:$0xff] %vm390, %v1975
      %2104 = vst.msk [vmem:[%s172 + $0x280] sm:$0xff] %vm390, %v1976
      %2105 = vst.msk [vmem:[%s172 + $0x288] sm:$0xff] %vm390, %v1977
      %2106 = vst.msk [vmem:[%s172 + $0x290] sm:$0xff] %vm390, %v1978
      %2107 = vst.msk [vmem:[%s172 + $0x298] sm:$0xff] %vm390, %v1979
      %2108 = vst.msk [vmem:[%s172 + $0x2a0] sm:$0xff] %vm390, %v1980
      %2109 = vst.msk [vmem:[%s172 + $0x2a8] sm:$0xff] %vm390, %v1981
      %2110 = vst.msk [vmem:[%s172 + $0x2b0] sm:$0xff] %vm390, %v1982
      %2111 = vst.msk [vmem:[%s172 + $0x2b8] sm:$0xff] %vm390, %v1983
      %2112 = vst.msk [vmem:[%s172 + $0x2c0] sm:$0xff] %vm390, %v1984
      %2113 = vst.msk [vmem:[%s172 + $0x2c8] sm:$0xff] %vm390, %v1985
      %2114 = vst.msk [vmem:[%s172 + $0x2d0] sm:$0xff] %vm390, %v1986
      %2115 = vst.msk [vmem:[%s172 + $0x2d8] sm:$0xff] %vm390, %v1987
      %2116 = vst.msk [vmem:[%s172 + $0x2e0] sm:$0xff] %vm390, %v1988
      %2117 = vst.msk [vmem:[%s172 + $0x2e8] sm:$0xff] %vm390, %v1989
      %2118 = vst.msk [vmem:[%s172 + $0x2f0] sm:$0xff] %vm390, %v1990
      %2119 = vst.msk [vmem:[%s172 + $0x2f8] sm:$0xff] %vm390, %v1991
      %2120 = vst.msk [vmem:[%s172 + $0x300] sm:$0xff] %vm390, %v1992
      %2121 = vst.msk [vmem:[%s172 + $0x308] sm:$0xff] %vm390, %v1993
      %2122 = vst.msk [vmem:[%s172 + $0x310] sm:$0xff] %vm390, %v1994
      %2123 = vst.msk [vmem:[%s172 + $0x318] sm:$0xff] %vm390, %v1995
      %2124 = vst.msk [vmem:[%s172 + $0x320] sm:$0xff] %vm390, %v1996
      %2125 = vst.msk [vmem:[%s172 + $0x328] sm:$0xff] %vm390, %v1997
      %2126 = vst.msk [vmem:[%s172 + $0x330] sm:$0xff] %vm390, %v1998
      %2127 = vst.msk [vmem:[%s172 + $0x338] sm:$0xff] %vm390, %v1999
      %2128 = vst.msk [vmem:[%s172 + $0x340] sm:$0xff] %vm390, %v2000
      %2129 = vst.msk [vmem:[%s172 + $0x348] sm:$0xff] %vm390, %v2001
      %2130 = vst.msk [vmem:[%s172 + $0x350] sm:$0xff] %vm390, %v2002
      %2131 = vst.msk [vmem:[%s172 + $0x358] sm:$0xff] %vm390, %v2003
      %2132 = vst.msk [vmem:[%s172 + $0x360] sm:$0xff] %vm390, %v2004
      %2133 = vst.msk [vmem:[%s172 + $0x368] sm:$0xff] %vm390, %v2005
      %2134 = vst.msk [vmem:[%s172 + $0x370] sm:$0xff] %vm390, %v2006
      %2135 = vst.msk [vmem:[%s172 + $0x378] sm:$0xff] %vm390, %v2007
      %2136 = vst.msk [vmem:[%s172 + $0x380] sm:$0xff] %vm390, %v2008
      %2137 = vst.msk [vmem:[%s172 + $0x388] sm:$0xff] %vm390, %v2009
      %2138 = vst.msk [vmem:[%s172 + $0x390] sm:$0xff] %vm390, %v2010
      %2139 = vst.msk [vmem:[%s172 + $0x398] sm:$0xff] %vm390, %v2011
      %2140 = vst.msk [vmem:[%s172 + $0x3a0] sm:$0xff] %vm390, %v2012
      %2141 = vst.msk [vmem:[%s172 + $0x3a8] sm:$0xff] %vm390, %v2013
      %2142 = vst.msk [vmem:[%s172 + $0x3b0] sm:$0xff] %vm390, %v2014
      %2143 = vst.msk [vmem:[%s172 + $0x3b8] sm:$0xff] %vm390, %v2015
      %2144 = vst.msk [vmem:[%s172 + $0x3c0] sm:$0xff] %vm390, %v2016
      %2145 = vst.msk [vmem:[%s172 + $0x3c8] sm:$0xff] %vm390, %v2017
      %2146 = vst.msk [vmem:[%s172 + $0x3d0] sm:$0xff] %vm390, %v2018
      %2147 = vst.msk [vmem:[%s172 + $0x3d8] sm:$0xff] %vm390, %v2019
      %2148 = vst.msk [vmem:[%s172 + $0x3e0] sm:$0xff] %vm390, %v2020
      %2149 = vst.msk [vmem:[%s172 + $0x3e8] sm:$0xff] %vm390, %v2021
      %2150 = vst.msk [vmem:[%s172 + $0x3f0] sm:$0xff] %vm390, %v2022
      %2151 = vst.msk [vmem:[%s172 + $0x3f8] sm:$0xff] %vm390, %v2023
      %s2152 = smul.u32 128, %s14
      %p2153 = scmp.lt.s32.totalorder %s2152, 255
      %s2154 = scalar_select %p2153, %s2152, 255
      %s2155 = smul.addr %s2154, 8
      %s2156 = scalar_lea.vmem %s3, %s2155
      // Predicated region
      $region33: #{tpu_custom_call.1} parent=31 // pred_check
        %p2157 = pneg %p100
      $region34: #{tpu_custom_call.1} parent=31 // pred_check_branch
        %2159 = sbr.rel (%p2157) target = $region36
      $region35: #{tpu_custom_call.1} parent=31 // pred_region
        %s2160 = smul.u32 128, %s14
      $region36: #{tpu_custom_call.1} parent=31 // pred_fallthru
        _
    $region32: #{tpu_custom_call.1} parent=5 // pred_fallthru
      _
    %p2161 = scmp.le.s32.totalorder 2, %s9
    // Predicated region
    $region37: #{tpu_custom_call.1} parent=5 // pred_check
      %p2162 = pneg %p2161
    $region38: #{tpu_custom_call.1} parent=5 // pred_check_branch
      %2164 = sbr.rel (%p2162) target = $region40
    $region39: #{tpu_custom_call.1} parent=5 // pred_region
      %s2165 = ssub.s32 %s9, 2
      // Predicated region
      $region41: #{tpu_custom_call.1} parent=39 // pred_check
        %p2166 = pneg %p106
      $region42: #{tpu_custom_call.1} parent=39 // pred_check_branch
        %2168 = sbr.rel (%p2166) target = $region44
      $region43: #{tpu_custom_call.1} parent=39 // pred_region
        %s2169 = smul.u32 128, %s15
        %p2170 = scmp.lt.s32.totalorder %s2169, 255
        %s2171 = scalar_select %p2170, %s2169, 255
        %s2172 = smul.addr %s2171, 8
        %s2173 = scalar_lea.vmem %s3, %s2172
      $region44: #{tpu_custom_call.1} parent=39 // pred_fallthru
        _
    $region40: #{tpu_custom_call.1} parent=5 // pred_fallthru
      _
  $region6: #{tpu_custom_call.1} parent=0 // loop_footer
    %s13 = sadd.s32 1, %s9
  $region7: #{tpu_custom_call.1} parent=0 // loop_footer_branch
    %8 = sbr.rel target = $region3
  $region8: #{tpu_custom_call.1} parent=0 // loop_exit
    _

</llo_original>
